<compile_context>
chip_gen: v7x
topology: tpu7x:2x2x1
jax: 0.10.0
libtpu: 0.0.40
codegen_flags: <defaults>
</compile_context>

<pallas_src>
import functools

import jax
import jax.numpy as jnp
from jax.experimental import pallas as pl
from jax.experimental.pallas import tpu as pltpu

NUM_GCN_LAYERS = 2          # args.num_gcn_layers
KNN_K = 8                   # config['knn_k']


def _round_up(x, m):
    return (x + m - 1) // m * m


# ----------------------- generation-aware VMEM budgeting ---------------------

@functools.lru_cache(maxsize=1)
def _vmem_capacity_bytes():
    """Physical per-core VMEM (128 MiB on v5e/v6e, 64 MiB per TC on v7x)."""
    try:
        return int(pltpu.get_tpu_info().vmem_capacity_bytes)
    except Exception:
        return 64 << 20      # conservative fallback, safe on every generation


def _is_small_vmem_chip():
    return _vmem_capacity_bytes() < (96 << 20)     # v7x-class: 64 MiB per TC


def _resident_vmem_budget():
    """Budget for keeping item_emb resident in VMEM (fused path)."""
    return (52 << 20) if _is_small_vmem_chip() else (100 << 20)


def _vmem_limit(estimate_bytes):
    # Raise the scoped-VMEM limit above the 16/32 MiB defaults; cap below the
    # physical VMEM of the current generation, leaving compiler headroom.
    hard_cap = (56 << 20) if _is_small_vmem_chip() else (100 << 20)
    return int(min(max(estimate_bytes, 32 << 20), hard_cap))


@functools.lru_cache(maxsize=1)
def _device_kind():
    try:
        return jax.devices()[0].device_kind.lower()
    except Exception:
        return ""


def _streamed_tiles():
    """(tm, tn, tk) for the streamed bf16 matmul, picked per generation.

    256^3 tiles are HBM-bound everywhere (~128 flop/byte).  512 tiles cross
    v5e's ~240 flop/byte roofline; 1024x1024x512 (~512 flop/byte) is needed to
    approach the MXU roofline on v6e and v7x.
    """
    if _is_small_vmem_chip():           # v7x: 64 MiB/TC, 3.2 TB/s HBM
        return 1024, 1024, 512
    if "v5" in _device_kind():          # v5e (and v5p): 512 already past roofline
        return 512, 512, 512
    return 1024, 1024, 512              # v6e (128 MiB VMEM easily fits this)


@functools.lru_cache(maxsize=1)
def _single_buffered_a_supported():
    """One-time capability probe for pl.Buffered(1) on a constant-index input."""
    def _probe(a_ref, b_ref, o_ref):
        o_ref[...] = a_ref[...] + b_ref[...]
    try:
        fn = pl.pallas_call(
            _probe,
            out_shape=jax.ShapeDtypeStruct((8, 256), jnp.float32),
            grid_spec=pltpu.PrefetchScalarGridSpec(
                num_scalar_prefetch=0,
                grid=(2,),
                in_specs=[
                    pl.BlockSpec((8, 128), lambda j: (0, 0),
                                 pipeline_mode=pl.Buffered(1)),
                    pl.BlockSpec((8, 128), lambda j: (0, j)),
                ],
                out_specs=pl.BlockSpec((8, 128), lambda j: (0, j))),
        )
        jax.jit(fn).lower(jnp.zeros((8, 128), jnp.float32),
                          jnp.zeros((8, 256), jnp.float32)).compile()
        return True
    except Exception:
        return False


# ----------------------- fused resident-A Pallas kernel ----------------------

def _fused_vmem_estimate(n, tn, a_bufs):
    n128 = _round_up(n, 128)
    return (a_bufs * n128 * n128 * 2          # resident bf16 A
            + 2 * n128 * tn * 4               # streamed f32 adj block (x2 bufs)
            + 2 * n128 * tn * 4               # f32 output block (x2 bufs)
            + 3 * n128 * tn * 4               # in-kernel temps: h f32 + bf16 casts
            + (4 << 20))                      # compiler internal scratch margin


def _item_graph_fused_kernel(emb_ref, adj_ref, out_ref, *, num_layers):
    """out = adj + A^L @ adj for one (N, tn) column block of mm_adj."""
    a = emb_ref[...]                           # bf16 MXU operand, resident
    # First layer straight from the streamed block (no scratch copy),
    # bf16 inputs with f32 accumulation on the MXU.
    h = jnp.dot(a, adj_ref[...].astype(jnp.bfloat16),
                preferred_element_type=jnp.float32)
    for _ in range(num_layers - 1):            # static unroll: L is small
        h = jnp.dot(a, h.astype(jnp.bfloat16),
                    preferred_element_type=jnp.float32)
    # Re-read adj for the residual so the f32 block is not held live across
    # both dots (lower VMEM / vreg pressure at large N).  Residual in f32.
    out_ref[...] = adj_ref[...] + h


def _fused_forward(item_emb_bf16, mm_adj, *, num_layers, tn, single_buffer_a):
    n = mm_adj.shape[0]
    n128 = _round_up(n, 128)
    tn_eff = min(tn, n128)
    # v7x shards the ("parallel",) column-block axis across its 2 TensorCores:
    # keep at least 2 column blocks whenever the padded width allows it.
    if _round_up(n, tn_eff) // tn_eff < 2 and n128 >= 256:
        tn_eff = min(n128, 128 * max(1, (n128 // 2) // 128))
    n_cols = _round_up(n, tn_eff)
    adj = mm_adj if n_cols == n else jnp.pad(mm_adj, ((0, 0), (0, n_cols - n)))

    emb_kwargs = {}
    if single_buffer_a:
        # Constant index_map -> A never changes between grid steps; a single
        # buffer halves its VMEM footprint vs. default double buffering.
        emb_kwargs["pipeline_mode"] = pl.Buffered(1)
    emb_spec = pl.BlockSpec((n, n), lambda j: (0, 0), **emb_kwargs)
    vmem_est = _fused_vmem_estimate(n, tn_eff, 1 if single_buffer_a else 2)

    out = pl.pallas_call(
        functools.partial(_item_graph_fused_kernel, num_layers=num_layers),
        out_shape=jax.ShapeDtypeStruct((n, n_cols), jnp.float32),
        grid_spec=pltpu.PrefetchScalarGridSpec(
            num_scalar_prefetch=0,
            grid=(n_cols // tn_eff,),
            in_specs=[
                emb_spec,                                      # resident A
                pl.BlockSpec((n, tn_eff), lambda j: (0, j)),   # adj column block
            ],
            out_specs=pl.BlockSpec((n, tn_eff), lambda j: (0, j))),
        compiler_params=pltpu.CompilerParams(
            dimension_semantics=("parallel",),
            vmem_limit_bytes=_vmem_limit(vmem_est)),
    )(item_emb_bf16, adj)
    return out if n_cols == n else out[:, :n]


# ----------------- streamed-A fallback (tiled matmul per layer) --------------

def _mm_kernel(a_ref, b_ref, o_ref, acc_ref):
    @pl.when(pl.program_id(2) == 0)
    def _():
        acc_ref[...] = jnp.zeros_like(acc_ref)
    acc_ref[...] += jnp.dot(a_ref[...], b_ref[...],
                            preferred_element_type=jnp.float32)
    @pl.when(pl.program_id(2) == pl.num_programs(2) - 1)
    def _():
        o_ref[...] = acc_ref[...].astype(o_ref.dtype)


def _tiled_matmul(a_bf16, b_bf16, *, tm, tn, tk, out_dtype=jnp.float32):
    m, k = a_bf16.shape
    _, n = b_bf16.shape
    out_bytes = jnp.dtype(out_dtype).itemsize
    vmem_est = (2 * (tm * tk + tk * tn) * 2     # double-buffered bf16 inputs
                + tm * tn * 4                   # f32 accumulator scratch
                + 2 * tm * tn * out_bytes       # double-buffered output
                + (4 << 20))
    return pl.pallas_call(
        _mm_kernel,
        out_shape=jax.ShapeDtypeStruct((m, n), out_dtype),
        grid_spec=pltpu.PrefetchScalarGridSpec(
            num_scalar_prefetch=0,
            grid=(m // tm, n // tn, k // tk),
            in_specs=[pl.BlockSpec((tm, tk), lambda i, j, kk: (i, kk)),
                      pl.BlockSpec((tk, tn), lambda i, j, kk: (kk, j))],
            out_specs=pl.BlockSpec((tm, tn), lambda i, j, kk: (i, j)),
            scratch_shapes=[pltpu.VMEM((tm, tn), jnp.float32)]),
        compiler_params=pltpu.CompilerParams(
            dimension_semantics=("parallel", "parallel", "arbitrary"),
            vmem_limit_bytes=_vmem_limit(vmem_est)),
    )(a_bf16, b_bf16)


def _largest_tile_divisor(t, extent):
    """Largest multiple of 128 <= t that divides extent (extent % 128 == 0)."""
    t = max(128, min(t, extent) // 128 * 128)
    while extent % t:
        t -= 128
    return t


def _streamed_forward(item_emb_bf16, mm_adj, *, num_layers, tm, tn, tk):
    n = mm_adj.shape[0]
    n128 = _round_up(n, 128)
    tm, tn, tk = (min(t, n128) for t in (tm, tn, tk))
    np_ = _round_up(n, max(tm, tn, tk))
    tm = _largest_tile_divisor(tm, np_)
    tn = _largest_tile_divisor(tn, np_)
    tk = _largest_tile_divisor(tk, np_)
    pad = np_ - n
    a = item_emb_bf16 if pad == 0 else jnp.pad(item_emb_bf16, ((0, pad), (0, pad)))
    adj = mm_adj if pad == 0 else jnp.pad(mm_adj, ((0, pad), (0, pad)))
    h = adj.astype(jnp.bfloat16)
    for layer in range(num_layers):
        last = layer == num_layers - 1
        # No residual operand inside the matmul kernel: it would pin 2*tm*tn*4
        # bytes of VMEM on every k-step while being read once; the trailing XLA
        # add below is negligible vs. the A traffic and funds the larger tiles.
        h = _tiled_matmul(a, h, tm=tm, tn=tn, tk=tk,
                          out_dtype=jnp.float32 if last else jnp.bfloat16)
    out = adj + h
    return out if pad == 0 else out[:n, :n]


# ------------------------------- public wrapper ------------------------------

def item_graph_forward(item_emb, mm_adj, *, num_layers=NUM_GCN_LAYERS,
                       tn=256, force_streamed=False):
    """item_rep = mm_adj + A^L @ mm_adj (bf16 MXU inputs, f32 accumulation)."""
    n = mm_adj.shape[0]
    assert item_emb.shape == (n, n)
    mm_adj = mm_adj.astype(jnp.float32)
    if num_layers <= 0:
        return mm_adj + mm_adj
    # TODO(synk): on v7x an fp8 (per-row scaled) resident A would halve VMEM and
    # roughly double MXU throughput if accuracy permits; kept bf16 here.
    item_emb_bf16 = item_emb.astype(jnp.bfloat16)

    single_buf = _single_buffered_a_supported()
    a_bufs = 1 if single_buf else 2
    budget = _resident_vmem_budget()

    chosen_tn = None
    if not force_streamed:
        n128 = _round_up(n, 128)
        # Prefer the requested column width; near the budget retry with tn=128
        # before giving up on the fused path (A is read from HBM once total in
        # the fused path vs. L*(N/tile) times in the streamed path).
        for cand in sorted({min(max(128, tn // 128 * 128), n128), 128},
                           reverse=True):
            if _fused_vmem_estimate(n, cand, a_bufs) <= budget:
                chosen_tn = cand
                break

    if chosen_tn is None:
        tm_s, tn_s, tk_s = _streamed_tiles()
        return _streamed_forward(item_emb_bf16, mm_adj, num_layers=num_layers,
                                 tm=tm_s, tn=tn_s, tk=tk_s)
    return _fused_forward(item_emb_bf16, mm_adj, num_layers=num_layers,
                          tn=chosen_tn, single_buffer_a=single_buf)


# --------------------------- plain-JAX glue (init) ---------------------------

def get_knn_adj_mat_dense(mm_embedding, knn_k):
    """Dense equivalent of get_knn_adj_mat + compute_normalized_laplacian."""
    norm = mm_embedding / jnp.linalg.norm(mm_embedding, axis=-1, keepdims=True)
    sim = norm @ norm.T
    _, knn_ind = jax.lax.top_k(sim, knn_k)
    n = sim.shape[0]
    rows = jnp.repeat(jnp.arange(n), knn_k)
    cols = knn_ind.reshape(-1)
    adj = jnp.zeros((n, n), jnp.float32).at[rows, cols].set(1.0)
    row_sum = 1e-07 + adj.sum(axis=-1)
    r_inv_sqrt = row_sum ** -0.5
    return adj * r_inv_sqrt[:, None] * r_inv_sqrt[None, :]


# TODO(synk): the original __init__ loads 'text_feat-v1.npy' and builds a
# GCN/MLP tower that Item_Graph.forward never invokes; features and item_emb
# are synthesized in-script and only the forward hot path is in Pallas.
# TODO(synk): layer 1 could exploit mm_adj's knn_k=8 sparsity (gather of 8
# columns of A per output column via PrefetchScalarGridSpec) for large N.

def reference_forward(item_emb, mm_adj, num_layers=NUM_GCN_LAYERS):
    h = mm_adj
    for _ in range(num_layers):
        h = item_emb @ h
    return mm_adj + h


if __name__ == "__main__":
    key = jax.random.PRNGKey(0)
    k_feat, k_emb = jax.random.split(key)

    num_item = 512      # -> 2 column blocks: exercises pipelining / megacore axis
    feat_dim = 64       # text feature dim

    t_feat = jax.random.normal(k_feat, (num_item, feat_dim), jnp.float32)
    item_emb = 0.05 * jax.random.normal(k_emb, (num_item, num_item), jnp.float32)
    mm_adj = get_knn_adj_mat_dense(t_feat, KNN_K)

    ref = reference_forward(item_emb, mm_adj)

    # Fused resident-A path (default at this size).
    out_fused = jax.block_until_ready(item_graph_forward(item_emb, mm_adj))
    # Streamed-A fallback path (what very large N would take).
    out_stream = jax.block_until_ready(
        item_graph_forward(item_emb, mm_adj, force_streamed=True))

    assert out_fused.shape == (num_item, num_item)
    assert out_stream.shape == (num_item, num_item)
    # bf16 MXU inputs with f32 accumulation: tolerance relaxed accordingly.
    assert jnp.allclose(out_fused, ref, atol=1e-2, rtol=1e-2)
    assert jnp.allclose(out_stream, ref, atol=1e-2, rtol=1e-2)

    print("KERNEL_OK")
</pallas_src>

<mosaic_0001>
module attributes {stable_mosaic.version = 11 : i64} {
  func.func @_item_graph_fused_kernel(%arg0: i32, %arg1: memref<512x512xbf16, #tpu.memory_space<vmem>>, %arg2: memref<512x256xf32, #tpu.memory_space<vmem>>, %arg3: memref<512x256xf32, #tpu.memory_space<vmem>>) attributes {dimension_semantics = [#tpu.dimension_semantics<parallel>], iteration_bounds = array<i64: 2>, scalar_prefetch = 0 : i64, scratch_operands = 0 : i64, tpu.core_type = #tpu.core_type<tc>, window_params = [{pipeline_mode = #tpu.pipeline_mode<synchronous>, transform_indices = @transform_0, window_bounds = array<i64: 512, 512>}, {transform_indices = @transform_1, window_bounds = array<i64: 512, 256>}, {transform_indices = @transform_2, window_bounds = array<i64: 512, 256>}]} {
    %c0 = arith.constant 0 : index
    %c0_0 = arith.constant 0 : index
    %0 = vector.load %arg1[%c0, %c0_0] : memref<512x512xbf16, #tpu.memory_space<vmem>>, vector<512x512xbf16>
    %c0_1 = arith.constant 0 : index
    %c0_2 = arith.constant 0 : index
    %1 = vector.load %arg2[%c0_1, %c0_2] : memref<512x256xf32, #tpu.memory_space<vmem>>, vector<512x256xf32>
    %2 = arith.truncf %1 : vector<512x256xf32> to vector<512x256xbf16>
    %cst = arith.constant dense<0.000000e+00> : vector<512x256xf32>
    %3 = tpu.matmul %0, %2, %cst {dimension_numbers = #tpu.dot_dimension_numbers<[1], [0], [0], [1], [0, 0, 1, 1], [], []>} : vector<512x512xbf16>, vector<512x256xbf16>, vector<512x256xf32> -> vector<512x256xf32>
    %4 = arith.truncf %3 : vector<512x256xf32> to vector<512x256xbf16>
    %cst_3 = arith.constant dense<0.000000e+00> : vector<512x256xf32>
    %5 = tpu.matmul %0, %4, %cst_3 {dimension_numbers = #tpu.dot_dimension_numbers<[1], [0], [0], [1], [0, 0, 1, 1], [], []>} : vector<512x512xbf16>, vector<512x256xbf16>, vector<512x256xf32> -> vector<512x256xf32>
    %c0_4 = arith.constant 0 : index
    %c0_5 = arith.constant 0 : index
    %6 = vector.load %arg2[%c0_4, %c0_5] : memref<512x256xf32, #tpu.memory_space<vmem>>, vector<512x256xf32>
    %7 = arith.addf %6, %5 : vector<512x256xf32>
    %c0_6 = arith.constant 0 : index
    %c0_7 = arith.constant 0 : index
    %8 = vector.load %arg3[%c0_6, %c0_7] : memref<512x256xf32, #tpu.memory_space<vmem>>, vector<512x256xf32>
    tpu.vector_store %arg3[%c0_6, %c0_7], %7 {strides = array<i32>} : memref<512x256xf32, #tpu.memory_space<vmem>>, vector<512x256xf32>,
    return
  }
  func.func @transform_0(%arg0: i32) -> (i32, i32) {
    %c0_i32 = arith.constant 0 : i32
    %c0_i32_0 = arith.constant 0 : i32
    %c0_i32_1 = arith.constant 0 : i32
    return %c0_i32, %c0_i32_0 : i32, i32
  }
  func.func @transform_1(%arg0: i32) -> (i32, i32) {
    %c0_i32 = arith.constant 0 : i32
    %c0_i32_0 = arith.constant 0 : i32
    return %c0_i32, %arg0 : i32, i32
  }
  func.func @transform_2(%arg0: i32) -> (i32, i32) {
    %c0_i32 = arith.constant 0 : i32
    %c0_i32_0 = arith.constant 0 : i32
    return %c0_i32, %arg0 : i32, i32
  }
}

</mosaic_0001>

<llo_original>
// kernel: tpu_custom_call.1
$region0: #{tpu_custom_call.1}
  #allocation0 [shape = 'u32[]', space=smem, size = 0x4, offset = 0x4, fixed_abs, tag = 'smem constant byte address 0x4 - core index']
  #allocation1 [shape = 'u32[144,128]{1,0:T(1,128)}', space=vmem, size = 0x12000, scoped, tag = 'internal scratch']
  %s0 = inlined_call_operand.hbm [shape: bf16[512,512], index: 0, kind: input, shape index: {}]
  %s1 = inlined_call_operand.hbm [shape: f32[512,512], index: 1, kind: input, shape index: {}]
  %s2 = inlined_call_operand.hbm [shape: f32[512,512], index: 2, kind: output, shape index: {}]
  %s3 = sld [smem:[#allocation0]]
  $region49: #{tpu_custom_call.1} parent=0
    _
  %s5 = ssub.s32 1, %s3
  %s6 = scalar_select 0, %s5, %s3
  $region1: #{tpu_custom_call.1} parent=0
    #allocation2 [shape = 'u8[524288]{0}', space=vmem, size = 0x80000, scoped, tag = 'input window, operand 0, single buffered']
    #allocation3 [shape = 's32[2]{0}', space=sflag, size = 0x8, scoped, tag = 'scoped memory for tpu_custom_call.1']
    #allocation4 [shape = 's32[2]{0}', space=sflag, size = 0x8, scoped, tag = 'scoped memory for tpu_custom_call.1']
    #allocation5 [shape = 'u8[1048576]{0}', space=vmem, size = 0x100000, scoped, tag = 'input window, operand 1']
    #allocation6 [shape = 's32[2]{0}', space=sflag, size = 0x8, scoped, tag = 'scoped memory for tpu_custom_call.1']
    #allocation7 [shape = 'u8[1048576]{0}', space=vmem, size = 0x100000, scoped, tag = 'output window, operand 0']
    %7 = vsyncpa [#allocation3], 0
    %8 = vsyncpa [#allocation6], 0
    %s9 = scalar_lea.sflag [#allocation6], 1
    %10 = vsyncpa %s9, 0
    %11 = vsyncpa [#allocation4], 0
    %s12 = scalar_lea.sflag [#allocation4], 1
    %13 = vsyncpa %s12, 0
    loop: start=0, step=1, limit=4
    $region2: #{tpu_custom_call.1} parent=1 // loop_pre_header
      _
    $region3: #{tpu_custom_call.1} parent=1 // loop_header
      %s15 = sphi 0, %s19
      %p16 = scmp.ge.s32.totalorder %s15, 4
      %s23 = sphi 0, %s23
      %s25 = sphi 0, %s23
      %s26 = sphi 0, %s25
      %s40 = sphi 0, %s26
      %s46 = sphi 0, %s48
      %s49 = sphi 0, %s46
      %s50 = sphi 0, %s49
      %s66 = sphi 0, %s50
      %s72 = sphi 0, %s74
      %s75 = sphi 0, %s72
      %s76 = sphi 0, %s75
      %s92 = sphi 0, %s76
    $region4: #{tpu_custom_call.1} parent=1 // loop_header_branch
      %18 = sbr.rel (%p16) target = $region8
    $region5: #{tpu_custom_call.1} parent=1 // loop_body
      %s20 = ssub.s32 %s15, 1
      %s21 = ssub.s32 %s15, 2
      %s22 = sadd.s32 %s15, 1
      %s24 = sadd.s32 %s23, 1
      %p27 = scmp.eq.s32.totalorder %s15, 1
      %p28 = scmp.ne.s32.totalorder %s23, %s25
      %p29 = scmp.eq.s32.totalorder %s15, 0
      %p30 = por %p28, %p29
      %p31 = scmp.ne.s32.totalorder %s23, %s25
      %p32 = scmp.eq.s32.totalorder %s20, 1
      %p33 = por %p31, %p32
      %p34 = scmp.ne.s32.totalorder %s25, %s26
      %p35 = scmp.eq.s32.totalorder %s20, 0
      %p36 = por %p34, %p35
      %p37 = scmp.ne.s32.totalorder %s25, %s26
      %p38 = scmp.eq.s32.totalorder %s21, 1
      %p39 = por %p37, %p38
      %p41 = scmp.ne.s32.totalorder %s26, %s40
      %p42 = scmp.eq.s32.totalorder %s21, 0
      %p43 = por %p41, %p42
      %s44 = ssub.s32 %s15, %s22
      %p45 = scmp.eq.s32.totalorder %s44, 0
      %s47 = sadd.s32 %s46, 1
      %s48 = scalar_select %p45, %s46, %s47
      %p51 = pneg %p45
      %p52 = scmp.eq.s32.totalorder %s15, 1
      %p53 = por %p51, %p52
      %p54 = scmp.ne.s32.totalorder %s46, %s49
      %p55 = scmp.eq.s32.totalorder %s15, 0
      %p56 = por %p54, %p55
      %p57 = scmp.ne.s32.totalorder %s46, %s49
      %p58 = scmp.eq.s32.totalorder %s20, 1
      %p59 = por %p57, %p58
      %p60 = scmp.ne.s32.totalorder %s49, %s50
      %p61 = scmp.eq.s32.totalorder %s20, 0
      %p62 = por %p60, %p61
      %p63 = scmp.ne.s32.totalorder %s49, %s50
      %p64 = scmp.eq.s32.totalorder %s21, 1
      %p65 = por %p63, %p64
      %p67 = scmp.ne.s32.totalorder %s50, %s66
      %p68 = scmp.eq.s32.totalorder %s21, 0
      %p69 = por %p67, %p68
      %s70 = ssub.s32 %s15, %s22
      %p71 = scmp.eq.s32.totalorder %s70, 0
      %s73 = sadd.s32 %s72, 1
      %s74 = scalar_select %p71, %s72, %s73
      %p77 = pneg %p71
      %p78 = scmp.eq.s32.totalorder %s15, 1
      %p79 = por %p77, %p78
      %p80 = scmp.ne.s32.totalorder %s72, %s75
      %p81 = scmp.eq.s32.totalorder %s15, 0
      %p82 = por %p80, %p81
      %p83 = scmp.ne.s32.totalorder %s72, %s75
      %p84 = scmp.eq.s32.totalorder %s20, 1
      %p85 = por %p83, %p84
      %p86 = scmp.ne.s32.totalorder %s75, %s76
      %p87 = scmp.eq.s32.totalorder %s20, 0
      %p88 = por %p86, %p87
      %p89 = scmp.ne.s32.totalorder %s75, %s76
      %p90 = scmp.eq.s32.totalorder %s21, 1
      %p91 = por %p89, %p90
      %p93 = scmp.ne.s32.totalorder %s76, %s92
      %p94 = scmp.eq.s32.totalorder %s21, 0
      %p95 = por %p93, %p94
      %p96 = scmp.le.s32.totalorder 1, %s15
      %p97 = scmp.lt.s32.totalorder %s15, 3
      %p98 = pnand %p96, %p97
      %p99 = pneg %p98
      // Predicated region
      $region9: #{tpu_custom_call.1} parent=5 // pred_check
        _
      $region10: #{tpu_custom_call.1} parent=5 // pred_check_branch
        %101 = sbr.rel (%p98) target = $region12
      $region11: #{tpu_custom_call.1} parent=5 // pred_region
        %s102 = ssub.s32 %s15, 1
        // Predicated region
        $region13: #{tpu_custom_call.1} parent=11 // pred_check
          %p103 = pneg %p36
        $region14: #{tpu_custom_call.1} parent=11 // pred_check_branch
          %105 = sbr.rel (%p103) target = $region16
        $region15: #{tpu_custom_call.1} parent=11 // pred_region
          %s107 = ssub.s32 16384, 16384
          %108 = vsyncadd [#allocation3], %s107
          %s109 = sshll.u32 [#allocation2], 4
          %s110 = int_to_ptr.vmem [resolvable:$true] %s109
          %115 = dma.hbm_to_vmem [thread:$0]  %s0, 16384, %s110, [#allocation3], 256, 256, 16
        $region16: #{tpu_custom_call.1} parent=11 // pred_fallthru
          _
      $region12: #{tpu_custom_call.1} parent=5 // pred_fallthru
        _
      %p116 = scmp.lt.s32.totalorder %s15, 2
      // Predicated region
      $region17: #{tpu_custom_call.1} parent=5 // pred_check
        %p117 = pneg %p116
      $region18: #{tpu_custom_call.1} parent=5 // pred_check_branch
        %119 = sbr.rel (%p117) target = $region20
      $region19: #{tpu_custom_call.1} parent=5 // pred_region
        // Predicated region
        $region21: #{tpu_custom_call.1} parent=19 // pred_check
          %p120 = pneg %p56
        $region22: #{tpu_custom_call.1} parent=19 // pred_check_branch
          %122 = sbr.rel (%p120) target = $region24
        $region23: #{tpu_custom_call.1} parent=19 // pred_region
          %s123 = sand.u32 %s46, 1
          %s124 = scalar_lea.sflag [#allocation6], %s123
          %s125 = sand.u32 %s46, 1
          %s126 = smul.addr %s125, 1024
          %s127 = scalar_lea.vmem [#allocation5], %s126
          %s128 = smul.u32 2, %s15
          %s130 = ssub.s32 16384, 16384
          %131 = vsyncadd %s124, %s130
          %s132 = smul.addr %s128, 128
          %s133 = scalar_lea.hbm %s1, %s132
          %s134 = sshll.u32 %s127, 4
          %s135 = int_to_ptr.vmem [resolvable:$true] %s134
          %140 = dma.hbm_to_vmem [thread:$0]  %s133, 16384, %s135, %s124, 512, 256, 16
        $region24: #{tpu_custom_call.1} parent=19 // pred_fallthru
          _
      $region20: #{tpu_custom_call.1} parent=5 // pred_fallthru
        _
      %p141 = scmp.le.s32.totalorder 1, %s15
      %p142 = scmp.lt.s32.totalorder %s15, 3
      %p143 = pnand %p141, %p142
      %p144 = pneg %p143
      // Predicated region
      $region25: #{tpu_custom_call.1} parent=5 // pred_check
        _
      $region26: #{tpu_custom_call.1} parent=5 // pred_check_branch
        %146 = sbr.rel (%p143) target = $region28
      $region27: #{tpu_custom_call.1} parent=5 // pred_region
        %s147 = ssub.s32 %s15, 1
        // Predicated region
        $region29: #{tpu_custom_call.1} parent=27 // pred_check
          %p148 = pneg %p36
        $region30: #{tpu_custom_call.1} parent=27 // pred_check_branch
          %150 = sbr.rel (%p148) target = $region32
        $region31: #{tpu_custom_call.1} parent=27 // pred_region
          %151 = dma.done [#allocation3], 16384
        $region32: #{tpu_custom_call.1} parent=27 // pred_fallthru
          _
        %s152 = sand.u32 %s49, 1
        %s153 = scalar_lea.sflag [#allocation6], %s152
        %s154 = sand.u32 %s49, 1
        %s155 = smul.addr %s154, 1024
        %s156 = scalar_lea.vmem [#allocation5], %s155
        // Predicated region
        $region33: #{tpu_custom_call.1} parent=27 // pred_check
          %p157 = pneg %p62
        $region34: #{tpu_custom_call.1} parent=27 // pred_check_branch
          %159 = sbr.rel (%p157) target = $region36
        $region35: #{tpu_custom_call.1} parent=27 // pred_region
          %160 = dma.done %s153, 16384
        $region36: #{tpu_custom_call.1} parent=27 // pred_fallthru
          _
        %p161 = pneg %p36
        %p162 = pneg %p33
        %s163 = sand.u32 %s49, 1
        %s164 = scalar_lea.sflag [#allocation6], %s163
        %s165 = sand.u32 %s49, 1
        %s166 = smul.addr %s165, 1024
        %s167 = scalar_lea.vmem [#allocation5], %s166
        %p168 = pneg %p62
        %p169 = pneg %p59
        %p170 = pneg %p88
        %p171 = pneg %p85
        %s172 = sand.u32 %s75, 1
        %s173 = scalar_lea.sflag [#allocation4], %s172
        %s174 = sand.u32 %s75, 1
        %s175 = smul.addr %s174, 1024
        %s176 = scalar_lea.vmem [#allocation7], %s175
        %s177 = smul.u32 2, %s20
        %s178 = smul.u32 2, %s20
        %v179 = vld [vmem:[#allocation2] sm:$0xff]
        %v180 = vld [vmem:[#allocation2 + $0x8] sm:$0xff]
        %v181 = vld [vmem:[#allocation2 + $0x10] sm:$0xff]
        %v182 = vld [vmem:[#allocation2 + $0x18] sm:$0xff]
        %v183 = vld [vmem:[#allocation2 + $0x20] sm:$0xff]
        %v184 = vld [vmem:[#allocation2 + $0x28] sm:$0xff]
        %v185 = vld [vmem:[#allocation2 + $0x30] sm:$0xff]
        %v186 = vld [vmem:[#allocation2 + $0x38] sm:$0xff]
        %v187 = vld [vmem:[#allocation2 + $0x40] sm:$0xff]
        %v188 = vld [vmem:[#allocation2 + $0x48] sm:$0xff]
        %v189 = vld [vmem:[#allocation2 + $0x50] sm:$0xff]
        %v190 = vld [vmem:[#allocation2 + $0x58] sm:$0xff]
        %v191 = vld [vmem:[#allocation2 + $0x60] sm:$0xff]
        %v192 = vld [vmem:[#allocation2 + $0x68] sm:$0xff]
        %v193 = vld [vmem:[#allocation2 + $0x70] sm:$0xff]
        %v194 = vld [vmem:[#allocation2 + $0x78] sm:$0xff]
        %v195 = vld [vmem:[#allocation2 + $0x80] sm:$0xff]
        %v196 = vld [vmem:[#allocation2 + $0x88] sm:$0xff]
        %v197 = vld [vmem:[#allocation2 + $0x90] sm:$0xff]
        %v198 = vld [vmem:[#allocation2 + $0x98] sm:$0xff]
        %v199 = vld [vmem:[#allocation2 + $0xa0] sm:$0xff]
        %v200 = vld [vmem:[#allocation2 + $0xa8] sm:$0xff]
        %v201 = vld [vmem:[#allocation2 + $0xb0] sm:$0xff]
        %v202 = vld [vmem:[#allocation2 + $0xb8] sm:$0xff]
        %v203 = vld [vmem:[#allocation2 + $0xc0] sm:$0xff]
        %v204 = vld [vmem:[#allocation2 + $0xc8] sm:$0xff]
        %v205 = vld [vmem:[#allocation2 + $0xd0] sm:$0xff]
        %v206 = vld [vmem:[#allocation2 + $0xd8] sm:$0xff]
        %v207 = vld [vmem:[#allocation2 + $0xe0] sm:$0xff]
        %v208 = vld [vmem:[#allocation2 + $0xe8] sm:$0xff]
        %v209 = vld [vmem:[#allocation2 + $0xf0] sm:$0xff]
        %v210 = vld [vmem:[#allocation2 + $0xf8] sm:$0xff]
        %v211 = vld [vmem:[#allocation2 + $0x100] sm:$0xff]
        %v212 = vld [vmem:[#allocation2 + $0x108] sm:$0xff]
        %v213 = vld [vmem:[#allocation2 + $0x110] sm:$0xff]
        %v214 = vld [vmem:[#allocation2 + $0x118] sm:$0xff]
        %v215 = vld [vmem:[#allocation2 + $0x120] sm:$0xff]
        %v216 = vld [vmem:[#allocation2 + $0x128] sm:$0xff]
        %v217 = vld [vmem:[#allocation2 + $0x130] sm:$0xff]
        %v218 = vld [vmem:[#allocation2 + $0x138] sm:$0xff]
        %v219 = vld [vmem:[#allocation2 + $0x140] sm:$0xff]
        %v220 = vld [vmem:[#allocation2 + $0x148] sm:$0xff]
        %v221 = vld [vmem:[#allocation2 + $0x150] sm:$0xff]
        %v222 = vld [vmem:[#allocation2 + $0x158] sm:$0xff]
        %v223 = vld [vmem:[#allocation2 + $0x160] sm:$0xff]
        %v224 = vld [vmem:[#allocation2 + $0x168] sm:$0xff]
        %v225 = vld [vmem:[#allocation2 + $0x170] sm:$0xff]
        %v226 = vld [vmem:[#allocation2 + $0x178] sm:$0xff]
        %v227 = vld [vmem:[#allocation2 + $0x180] sm:$0xff]
        %v228 = vld [vmem:[#allocation2 + $0x188] sm:$0xff]
        %v229 = vld [vmem:[#allocation2 + $0x190] sm:$0xff]
        %v230 = vld [vmem:[#allocation2 + $0x198] sm:$0xff]
        %v231 = vld [vmem:[#allocation2 + $0x1a0] sm:$0xff]
        %v232 = vld [vmem:[#allocation2 + $0x1a8] sm:$0xff]
        %v233 = vld [vmem:[#allocation2 + $0x1b0] sm:$0xff]
        %v234 = vld [vmem:[#allocation2 + $0x1b8] sm:$0xff]
        %v235 = vld [vmem:[#allocation2 + $0x1c0] sm:$0xff]
        %v236 = vld [vmem:[#allocation2 + $0x1c8] sm:$0xff]
        %v237 = vld [vmem:[#allocation2 + $0x1d0] sm:$0xff]
        %v238 = vld [vmem:[#allocation2 + $0x1d8] sm:$0xff]
        %v239 = vld [vmem:[#allocation2 + $0x1e0] sm:$0xff]
        %v240 = vld [vmem:[#allocation2 + $0x1e8] sm:$0xff]
        %v241 = vld [vmem:[#allocation2 + $0x1f0] sm:$0xff]
        %v242 = vld [vmem:[#allocation2 + $0x1f8] sm:$0xff]
        %v243 = vld [vmem:[#allocation2 + $0x200] sm:$0xff]
        %v244 = vld [vmem:[#allocation2 + $0x208] sm:$0xff]
        %v245 = vld [vmem:[#allocation2 + $0x210] sm:$0xff]
        %v246 = vld [vmem:[#allocation2 + $0x218] sm:$0xff]
        %v247 = vld [vmem:[#allocation2 + $0x220] sm:$0xff]
        %v248 = vld [vmem:[#allocation2 + $0x228] sm:$0xff]
        %v249 = vld [vmem:[#allocation2 + $0x230] sm:$0xff]
        %v250 = vld [vmem:[#allocation2 + $0x238] sm:$0xff]
        %v251 = vld [vmem:[#allocation2 + $0x240] sm:$0xff]
        %v252 = vld [vmem:[#allocation2 + $0x248] sm:$0xff]
        %v253 = vld [vmem:[#allocation2 + $0x250] sm:$0xff]
        %v254 = vld [vmem:[#allocation2 + $0x258] sm:$0xff]
        %v255 = vld [vmem:[#allocation2 + $0x260] sm:$0xff]
        %v256 = vld [vmem:[#allocation2 + $0x268] sm:$0xff]
        %v257 = vld [vmem:[#allocation2 + $0x270] sm:$0xff]
        %v258 = vld [vmem:[#allocation2 + $0x278] sm:$0xff]
        %v259 = vld [vmem:[#allocation2 + $0x280] sm:$0xff]
        %v260 = vld [vmem:[#allocation2 + $0x288] sm:$0xff]
        %v261 = vld [vmem:[#allocation2 + $0x290] sm:$0xff]
        %v262 = vld [vmem:[#allocation2 + $0x298] sm:$0xff]
        %v263 = vld [vmem:[#allocation2 + $0x2a0] sm:$0xff]
        %v264 = vld [vmem:[#allocation2 + $0x2a8] sm:$0xff]
        %v265 = vld [vmem:[#allocation2 + $0x2b0] sm:$0xff]
        %v266 = vld [vmem:[#allocation2 + $0x2b8] sm:$0xff]
        %v267 = vld [vmem:[#allocation2 + $0x2c0] sm:$0xff]
        %v268 = vld [vmem:[#allocation2 + $0x2c8] sm:$0xff]
        %v269 = vld [vmem:[#allocation2 + $0x2d0] sm:$0xff]
        %v270 = vld [vmem:[#allocation2 + $0x2d8] sm:$0xff]
        %v271 = vld [vmem:[#allocation2 + $0x2e0] sm:$0xff]
        %v272 = vld [vmem:[#allocation2 + $0x2e8] sm:$0xff]
        %v273 = vld [vmem:[#allocation2 + $0x2f0] sm:$0xff]
        %v274 = vld [vmem:[#allocation2 + $0x2f8] sm:$0xff]
        %v275 = vld [vmem:[#allocation2 + $0x300] sm:$0xff]
        %v276 = vld [vmem:[#allocation2 + $0x308] sm:$0xff]
        %v277 = vld [vmem:[#allocation2 + $0x310] sm:$0xff]
        %v278 = vld [vmem:[#allocation2 + $0x318] sm:$0xff]
        %v279 = vld [vmem:[#allocation2 + $0x320] sm:$0xff]
        %v280 = vld [vmem:[#allocation2 + $0x328] sm:$0xff]
        %v281 = vld [vmem:[#allocation2 + $0x330] sm:$0xff]
        %v282 = vld [vmem:[#allocation2 + $0x338] sm:$0xff]
        %v283 = vld [vmem:[#allocation2 + $0x340] sm:$0xff]
        %v284 = vld [vmem:[#allocation2 + $0x348] sm:$0xff]
        %v285 = vld [vmem:[#allocation2 + $0x350] sm:$0xff]
        %v286 = vld [vmem:[#allocation2 + $0x358] sm:$0xff]
        %v287 = vld [vmem:[#allocation2 + $0x360] sm:$0xff]
        %v288 = vld [vmem:[#allocation2 + $0x368] sm:$0xff]
        %v289 = vld [vmem:[#allocation2 + $0x370] sm:$0xff]
        %v290 = vld [vmem:[#allocation2 + $0x378] sm:$0xff]
        %v291 = vld [vmem:[#allocation2 + $0x380] sm:$0xff]
        %v292 = vld [vmem:[#allocation2 + $0x388] sm:$0xff]
        %v293 = vld [vmem:[#allocation2 + $0x390] sm:$0xff]
        %v294 = vld [vmem:[#allocation2 + $0x398] sm:$0xff]
        %v295 = vld [vmem:[#allocation2 + $0x3a0] sm:$0xff]
        %v296 = vld [vmem:[#allocation2 + $0x3a8] sm:$0xff]
        %v297 = vld [vmem:[#allocation2 + $0x3b0] sm:$0xff]
        %v298 = vld [vmem:[#allocation2 + $0x3b8] sm:$0xff]
        %v299 = vld [vmem:[#allocation2 + $0x3c0] sm:$0xff]
        %v300 = vld [vmem:[#allocation2 + $0x3c8] sm:$0xff]
        %v301 = vld [vmem:[#allocation2 + $0x3d0] sm:$0xff]
        %v302 = vld [vmem:[#allocation2 + $0x3d8] sm:$0xff]
        %v303 = vld [vmem:[#allocation2 + $0x3e0] sm:$0xff]
        %v304 = vld [vmem:[#allocation2 + $0x3e8] sm:$0xff]
        %v305 = vld [vmem:[#allocation2 + $0x3f0] sm:$0xff]
        %v306 = vld [vmem:[#allocation2 + $0x3f8] sm:$0xff]
        %v307 = vld [vmem:[%s156] sm:$0xff]
        %v308 = vld [vmem:[%s156 + $0x8] sm:$0xff]
        %v309 = vld [vmem:[%s156 + $0x10] sm:$0xff]
        %v310 = vld [vmem:[%s156 + $0x18] sm:$0xff]
        %v311 = vld [vmem:[%s156 + $0x20] sm:$0xff]
        %v312 = vld [vmem:[%s156 + $0x28] sm:$0xff]
        %v313 = vld [vmem:[%s156 + $0x30] sm:$0xff]
        %v314 = vld [vmem:[%s156 + $0x38] sm:$0xff]
        %v315 = vld [vmem:[%s156 + $0x40] sm:$0xff]
        %v316 = vld [vmem:[%s156 + $0x48] sm:$0xff]
        %v317 = vld [vmem:[%s156 + $0x50] sm:$0xff]
        %v318 = vld [vmem:[%s156 + $0x58] sm:$0xff]
        %v319 = vld [vmem:[%s156 + $0x60] sm:$0xff]
        %v320 = vld [vmem:[%s156 + $0x68] sm:$0xff]
        %v321 = vld [vmem:[%s156 + $0x70] sm:$0xff]
        %v322 = vld [vmem:[%s156 + $0x78] sm:$0xff]
        %v323 = vld [vmem:[%s156 + $0x80] sm:$0xff]
        %v324 = vld [vmem:[%s156 + $0x88] sm:$0xff]
        %v325 = vld [vmem:[%s156 + $0x90] sm:$0xff]
        %v326 = vld [vmem:[%s156 + $0x98] sm:$0xff]
        %v327 = vld [vmem:[%s156 + $0xa0] sm:$0xff]
        %v328 = vld [vmem:[%s156 + $0xa8] sm:$0xff]
        %v329 = vld [vmem:[%s156 + $0xb0] sm:$0xff]
        %v330 = vld [vmem:[%s156 + $0xb8] sm:$0xff]
        %v331 = vld [vmem:[%s156 + $0xc0] sm:$0xff]
        %v332 = vld [vmem:[%s156 + $0xc8] sm:$0xff]
        %v333 = vld [vmem:[%s156 + $0xd0] sm:$0xff]
        %v334 = vld [vmem:[%s156 + $0xd8] sm:$0xff]
        %v335 = vld [vmem:[%s156 + $0xe0] sm:$0xff]
        %v336 = vld [vmem:[%s156 + $0xe8] sm:$0xff]
        %v337 = vld [vmem:[%s156 + $0xf0] sm:$0xff]
        %v338 = vld [vmem:[%s156 + $0xf8] sm:$0xff]
        %v339 = vld [vmem:[%s156 + $0x100] sm:$0xff]
        %v340 = vld [vmem:[%s156 + $0x108] sm:$0xff]
        %v341 = vld [vmem:[%s156 + $0x110] sm:$0xff]
        %v342 = vld [vmem:[%s156 + $0x118] sm:$0xff]
        %v343 = vld [vmem:[%s156 + $0x120] sm:$0xff]
        %v344 = vld [vmem:[%s156 + $0x128] sm:$0xff]
        %v345 = vld [vmem:[%s156 + $0x130] sm:$0xff]
        %v346 = vld [vmem:[%s156 + $0x138] sm:$0xff]
        %v347 = vld [vmem:[%s156 + $0x140] sm:$0xff]
        %v348 = vld [vmem:[%s156 + $0x148] sm:$0xff]
        %v349 = vld [vmem:[%s156 + $0x150] sm:$0xff]
        %v350 = vld [vmem:[%s156 + $0x158] sm:$0xff]
        %v351 = vld [vmem:[%s156 + $0x160] sm:$0xff]
        %v352 = vld [vmem:[%s156 + $0x168] sm:$0xff]
        %v353 = vld [vmem:[%s156 + $0x170] sm:$0xff]
        %v354 = vld [vmem:[%s156 + $0x178] sm:$0xff]
        %v355 = vld [vmem:[%s156 + $0x180] sm:$0xff]
        %v356 = vld [vmem:[%s156 + $0x188] sm:$0xff]
        %v357 = vld [vmem:[%s156 + $0x190] sm:$0xff]
        %v358 = vld [vmem:[%s156 + $0x198] sm:$0xff]
        %v359 = vld [vmem:[%s156 + $0x1a0] sm:$0xff]
        %v360 = vld [vmem:[%s156 + $0x1a8] sm:$0xff]
        %v361 = vld [vmem:[%s156 + $0x1b0] sm:$0xff]
        %v362 = vld [vmem:[%s156 + $0x1b8] sm:$0xff]
        %v363 = vld [vmem:[%s156 + $0x1c0] sm:$0xff]
        %v364 = vld [vmem:[%s156 + $0x1c8] sm:$0xff]
        %v365 = vld [vmem:[%s156 + $0x1d0] sm:$0xff]
        %v366 = vld [vmem:[%s156 + $0x1d8] sm:$0xff]
        %v367 = vld [vmem:[%s156 + $0x1e0] sm:$0xff]
        %v368 = vld [vmem:[%s156 + $0x1e8] sm:$0xff]
        %v369 = vld [vmem:[%s156 + $0x1f0] sm:$0xff]
        %v370 = vld [vmem:[%s156 + $0x1f8] sm:$0xff]
        %v371 = vld [vmem:[%s156 + $0x200] sm:$0xff]
        %v372 = vld [vmem:[%s156 + $0x208] sm:$0xff]
        %v373 = vld [vmem:[%s156 + $0x210] sm:$0xff]
        %v374 = vld [vmem:[%s156 + $0x218] sm:$0xff]
        %v375 = vld [vmem:[%s156 + $0x220] sm:$0xff]
        %v376 = vld [vmem:[%s156 + $0x228] sm:$0xff]
        %v377 = vld [vmem:[%s156 + $0x230] sm:$0xff]
        %v378 = vld [vmem:[%s156 + $0x238] sm:$0xff]
        %v379 = vld [vmem:[%s156 + $0x240] sm:$0xff]
        %v380 = vld [vmem:[%s156 + $0x248] sm:$0xff]
        %v381 = vld [vmem:[%s156 + $0x250] sm:$0xff]
        %v382 = vld [vmem:[%s156 + $0x258] sm:$0xff]
        %v383 = vld [vmem:[%s156 + $0x260] sm:$0xff]
        %v384 = vld [vmem:[%s156 + $0x268] sm:$0xff]
        %v385 = vld [vmem:[%s156 + $0x270] sm:$0xff]
        %v386 = vld [vmem:[%s156 + $0x278] sm:$0xff]
        %v387 = vld [vmem:[%s156 + $0x280] sm:$0xff]
        %v388 = vld [vmem:[%s156 + $0x288] sm:$0xff]
        %v389 = vld [vmem:[%s156 + $0x290] sm:$0xff]
        %v390 = vld [vmem:[%s156 + $0x298] sm:$0xff]
        %v391 = vld [vmem:[%s156 + $0x2a0] sm:$0xff]
        %v392 = vld [vmem:[%s156 + $0x2a8] sm:$0xff]
        %v393 = vld [vmem:[%s156 + $0x2b0] sm:$0xff]
        %v394 = vld [vmem:[%s156 + $0x2b8] sm:$0xff]
        %v395 = vld [vmem:[%s156 + $0x2c0] sm:$0xff]
        %v396 = vld [vmem:[%s156 + $0x2c8] sm:$0xff]
        %v397 = vld [vmem:[%s156 + $0x2d0] sm:$0xff]
        %v398 = vld [vmem:[%s156 + $0x2d8] sm:$0xff]
        %v399 = vld [vmem:[%s156 + $0x2e0] sm:$0xff]
        %v400 = vld [vmem:[%s156 + $0x2e8] sm:$0xff]
        %v401 = vld [vmem:[%s156 + $0x2f0] sm:$0xff]
        %v402 = vld [vmem:[%s156 + $0x2f8] sm:$0xff]
        %v403 = vld [vmem:[%s156 + $0x300] sm:$0xff]
        %v404 = vld [vmem:[%s156 + $0x308] sm:$0xff]
        %v405 = vld [vmem:[%s156 + $0x310] sm:$0xff]
        %v406 = vld [vmem:[%s156 + $0x318] sm:$0xff]
        %v407 = vld [vmem:[%s156 + $0x320] sm:$0xff]
        %v408 = vld [vmem:[%s156 + $0x328] sm:$0xff]
        %v409 = vld [vmem:[%s156 + $0x330] sm:$0xff]
        %v410 = vld [vmem:[%s156 + $0x338] sm:$0xff]
        %v411 = vld [vmem:[%s156 + $0x340] sm:$0xff]
        %v412 = vld [vmem:[%s156 + $0x348] sm:$0xff]
        %v413 = vld [vmem:[%s156 + $0x350] sm:$0xff]
        %v414 = vld [vmem:[%s156 + $0x358] sm:$0xff]
        %v415 = vld [vmem:[%s156 + $0x360] sm:$0xff]
        %v416 = vld [vmem:[%s156 + $0x368] sm:$0xff]
        %v417 = vld [vmem:[%s156 + $0x370] sm:$0xff]
        %v418 = vld [vmem:[%s156 + $0x378] sm:$0xff]
        %v419 = vld [vmem:[%s156 + $0x380] sm:$0xff]
        %v420 = vld [vmem:[%s156 + $0x388] sm:$0xff]
        %v421 = vld [vmem:[%s156 + $0x390] sm:$0xff]
        %v422 = vld [vmem:[%s156 + $0x398] sm:$0xff]
        %v423 = vld [vmem:[%s156 + $0x3a0] sm:$0xff]
        %v424 = vld [vmem:[%s156 + $0x3a8] sm:$0xff]
        %v425 = vld [vmem:[%s156 + $0x3b0] sm:$0xff]
        %v426 = vld [vmem:[%s156 + $0x3b8] sm:$0xff]
        %v427 = vld [vmem:[%s156 + $0x3c0] sm:$0xff]
        %v428 = vld [vmem:[%s156 + $0x3c8] sm:$0xff]
        %v429 = vld [vmem:[%s156 + $0x3d0] sm:$0xff]
        %v430 = vld [vmem:[%s156 + $0x3d8] sm:$0xff]
        %v431 = vld [vmem:[%s156 + $0x3e0] sm:$0xff]
        %v432 = vld [vmem:[%s156 + $0x3e8] sm:$0xff]
        %v433 = vld [vmem:[%s156 + $0x3f0] sm:$0xff]
        %v434 = vld [vmem:[%s156 + $0x3f8] sm:$0xff]
        %v435 = vpack.c.bf16 %v309, %v307
        %v436 = vpack.c.bf16 %v310, %v308
        %v437 = vpack.c.bf16 %v313, %v311
        %v438 = vpack.c.bf16 %v314, %v312
        %v439 = vpack.c.bf16 %v317, %v315
        %v440 = vpack.c.bf16 %v318, %v316
        %v441 = vpack.c.bf16 %v321, %v319
        %v442 = vpack.c.bf16 %v322, %v320
        %v443 = vpack.c.bf16 %v325, %v323
        %v444 = vpack.c.bf16 %v326, %v324
        %v445 = vpack.c.bf16 %v329, %v327
        %v446 = vpack.c.bf16 %v330, %v328
        %v447 = vpack.c.bf16 %v333, %v331
        %v448 = vpack.c.bf16 %v334, %v332
        %v449 = vpack.c.bf16 %v337, %v335
        %v450 = vpack.c.bf16 %v338, %v336
        %v451 = vpack.c.bf16 %v341, %v339
        %v452 = vpack.c.bf16 %v342, %v340
        %v453 = vpack.c.bf16 %v345, %v343
        %v454 = vpack.c.bf16 %v346, %v344
        %v455 = vpack.c.bf16 %v349, %v347
        %v456 = vpack.c.bf16 %v350, %v348
        %v457 = vpack.c.bf16 %v353, %v351
        %v458 = vpack.c.bf16 %v354, %v352
        %v459 = vpack.c.bf16 %v357, %v355
        %v460 = vpack.c.bf16 %v358, %v356
        %v461 = vpack.c.bf16 %v361, %v359
        %v462 = vpack.c.bf16 %v362, %v360
        %v463 = vpack.c.bf16 %v365, %v363
        %v464 = vpack.c.bf16 %v366, %v364
        %v465 = vpack.c.bf16 %v369, %v367
        %v466 = vpack.c.bf16 %v370, %v368
        %v467 = vpack.c.bf16 %v373, %v371
        %v468 = vpack.c.bf16 %v374, %v372
        %v469 = vpack.c.bf16 %v377, %v375
        %v470 = vpack.c.bf16 %v378, %v376
        %v471 = vpack.c.bf16 %v381, %v379
        %v472 = vpack.c.bf16 %v382, %v380
        %v473 = vpack.c.bf16 %v385, %v383
        %v474 = vpack.c.bf16 %v386, %v384
        %v475 = vpack.c.bf16 %v389, %v387
        %v476 = vpack.c.bf16 %v390, %v388
        %v477 = vpack.c.bf16 %v393, %v391
        %v478 = vpack.c.bf16 %v394, %v392
        %v479 = vpack.c.bf16 %v397, %v395
        %v480 = vpack.c.bf16 %v398, %v396
        %v481 = vpack.c.bf16 %v401, %v399
        %v482 = vpack.c.bf16 %v402, %v400
        %v483 = vpack.c.bf16 %v405, %v403
        %v484 = vpack.c.bf16 %v406, %v404
        %v485 = vpack.c.bf16 %v409, %v407
        %v486 = vpack.c.bf16 %v410, %v408
        %v487 = vpack.c.bf16 %v413, %v411
        %v488 = vpack.c.bf16 %v414, %v412
        %v489 = vpack.c.bf16 %v417, %v415
        %v490 = vpack.c.bf16 %v418, %v416
        %v491 = vpack.c.bf16 %v421, %v419
        %v492 = vpack.c.bf16 %v422, %v420
        %v493 = vpack.c.bf16 %v425, %v423
        %v494 = vpack.c.bf16 %v426, %v424
        %v495 = vpack.c.bf16 %v429, %v427
        %v496 = vpack.c.bf16 %v430, %v428
        %v497 = vpack.c.bf16 %v433, %v431
        %v498 = vpack.c.bf16 %v434, %v432
        %v627 = vunpack.c.l.b16 %v179
        %v628 = vunpack.c.h.b16 %v179
        %v629 = vunpack.c.l.b16 %v180
        %v630 = vunpack.c.h.b16 %v180
        %v631 = vunpack.c.l.b16 %v181
        %v632 = vunpack.c.h.b16 %v181
        %v633 = vunpack.c.l.b16 %v182
        %v634 = vunpack.c.h.b16 %v182
        %v635 = vunpack.c.l.b16 %v183
        %v636 = vunpack.c.h.b16 %v183
        %v637 = vunpack.c.l.b16 %v184
        %v638 = vunpack.c.h.b16 %v184
        %v639 = vunpack.c.l.b16 %v185
        %v640 = vunpack.c.h.b16 %v185
        %v641 = vunpack.c.l.b16 %v186
        %v642 = vunpack.c.h.b16 %v186
        %v643 = vunpack.c.l.b16 %v187
        %v644 = vunpack.c.h.b16 %v187
        %v645 = vunpack.c.l.b16 %v188
        %v646 = vunpack.c.h.b16 %v188
        %v647 = vunpack.c.l.b16 %v189
        %v648 = vunpack.c.h.b16 %v189
        %v649 = vunpack.c.l.b16 %v190
        %v650 = vunpack.c.h.b16 %v190
        %v651 = vunpack.c.l.b16 %v191
        %v652 = vunpack.c.h.b16 %v191
        %v653 = vunpack.c.l.b16 %v192
        %v654 = vunpack.c.h.b16 %v192
        %v655 = vunpack.c.l.b16 %v193
        %v656 = vunpack.c.h.b16 %v193
        %v657 = vunpack.c.l.b16 %v194
        %v658 = vunpack.c.h.b16 %v194
        %v659 = vunpack.c.l.b16 %v195
        %v660 = vunpack.c.h.b16 %v195
        %v661 = vunpack.c.l.b16 %v196
        %v662 = vunpack.c.h.b16 %v196
        %v663 = vunpack.c.l.b16 %v197
        %v664 = vunpack.c.h.b16 %v197
        %v665 = vunpack.c.l.b16 %v198
        %v666 = vunpack.c.h.b16 %v198
        %v667 = vunpack.c.l.b16 %v199
        %v668 = vunpack.c.h.b16 %v199
        %v669 = vunpack.c.l.b16 %v200
        %v670 = vunpack.c.h.b16 %v200
        %v671 = vunpack.c.l.b16 %v201
        %v672 = vunpack.c.h.b16 %v201
        %v673 = vunpack.c.l.b16 %v202
        %v674 = vunpack.c.h.b16 %v202
        %v675 = vunpack.c.l.b16 %v203
        %v676 = vunpack.c.h.b16 %v203
        %v677 = vunpack.c.l.b16 %v204
        %v678 = vunpack.c.h.b16 %v204
        %v679 = vunpack.c.l.b16 %v205
        %v680 = vunpack.c.h.b16 %v205
        %v681 = vunpack.c.l.b16 %v206
        %v682 = vunpack.c.h.b16 %v206
        %v683 = vunpack.c.l.b16 %v207
        %v684 = vunpack.c.h.b16 %v207
        %v685 = vunpack.c.l.b16 %v208
        %v686 = vunpack.c.h.b16 %v208
        %v687 = vunpack.c.l.b16 %v209
        %v688 = vunpack.c.h.b16 %v209
        %v689 = vunpack.c.l.b16 %v210
        %v690 = vunpack.c.h.b16 %v210
        %v691 = vunpack.c.l.b16 %v211
        %v692 = vunpack.c.h.b16 %v211
        %v693 = vunpack.c.l.b16 %v212
        %v694 = vunpack.c.h.b16 %v212
        %v695 = vunpack.c.l.b16 %v213
        %v696 = vunpack.c.h.b16 %v213
        %v697 = vunpack.c.l.b16 %v214
        %v698 = vunpack.c.h.b16 %v214
        %v699 = vunpack.c.l.b16 %v215
        %v700 = vunpack.c.h.b16 %v215
        %v701 = vunpack.c.l.b16 %v216
        %v702 = vunpack.c.h.b16 %v216
        %v703 = vunpack.c.l.b16 %v217
        %v704 = vunpack.c.h.b16 %v217
        %v705 = vunpack.c.l.b16 %v218
        %v706 = vunpack.c.h.b16 %v218
        %v707 = vunpack.c.l.b16 %v219
        %v708 = vunpack.c.h.b16 %v219
        %v709 = vunpack.c.l.b16 %v220
        %v710 = vunpack.c.h.b16 %v220
        %v711 = vunpack.c.l.b16 %v221
        %v712 = vunpack.c.h.b16 %v221
        %v713 = vunpack.c.l.b16 %v222
        %v714 = vunpack.c.h.b16 %v222
        %v715 = vunpack.c.l.b16 %v223
        %v716 = vunpack.c.h.b16 %v223
        %v717 = vunpack.c.l.b16 %v224
        %v718 = vunpack.c.h.b16 %v224
        %v719 = vunpack.c.l.b16 %v225
        %v720 = vunpack.c.h.b16 %v225
        %v721 = vunpack.c.l.b16 %v226
        %v722 = vunpack.c.h.b16 %v226
        %v723 = vunpack.c.l.b16 %v227
        %v724 = vunpack.c.h.b16 %v227
        %v725 = vunpack.c.l.b16 %v228
        %v726 = vunpack.c.h.b16 %v228
        %v727 = vunpack.c.l.b16 %v229
        %v728 = vunpack.c.h.b16 %v229
        %v729 = vunpack.c.l.b16 %v230
        %v730 = vunpack.c.h.b16 %v230
        %v731 = vunpack.c.l.b16 %v231
        %v732 = vunpack.c.h.b16 %v231
        %v733 = vunpack.c.l.b16 %v232
        %v734 = vunpack.c.h.b16 %v232
        %v735 = vunpack.c.l.b16 %v233
        %v736 = vunpack.c.h.b16 %v233
        %v737 = vunpack.c.l.b16 %v234
        %v738 = vunpack.c.h.b16 %v234
        %v739 = vunpack.c.l.b16 %v235
        %v740 = vunpack.c.h.b16 %v235
        %v741 = vunpack.c.l.b16 %v236
        %v742 = vunpack.c.h.b16 %v236
        %v743 = vunpack.c.l.b16 %v237
        %v744 = vunpack.c.h.b16 %v237
        %v745 = vunpack.c.l.b16 %v238
        %v746 = vunpack.c.h.b16 %v238
        %v747 = vunpack.c.l.b16 %v239
        %v748 = vunpack.c.h.b16 %v239
        %v749 = vunpack.c.l.b16 %v240
        %v750 = vunpack.c.h.b16 %v240
        %v751 = vunpack.c.l.b16 %v241
        %v752 = vunpack.c.h.b16 %v241
        %v753 = vunpack.c.l.b16 %v242
        %v754 = vunpack.c.h.b16 %v242
        %v755 = vunpack.c.l.b16 %v243
        %v756 = vunpack.c.h.b16 %v243
        %v757 = vunpack.c.l.b16 %v244
        %v758 = vunpack.c.h.b16 %v244
        %v759 = vunpack.c.l.b16 %v245
        %v760 = vunpack.c.h.b16 %v245
        %v761 = vunpack.c.l.b16 %v246
        %v762 = vunpack.c.h.b16 %v246
        %v763 = vunpack.c.l.b16 %v247
        %v764 = vunpack.c.h.b16 %v247
        %v765 = vunpack.c.l.b16 %v248
        %v766 = vunpack.c.h.b16 %v248
        %v767 = vunpack.c.l.b16 %v249
        %v768 = vunpack.c.h.b16 %v249
        %v769 = vunpack.c.l.b16 %v250
        %v770 = vunpack.c.h.b16 %v250
        %v771 = vunpack.c.l.b16 %v251
        %v772 = vunpack.c.h.b16 %v251
        %v773 = vunpack.c.l.b16 %v252
        %v774 = vunpack.c.h.b16 %v252
        %v775 = vunpack.c.l.b16 %v253
        %v776 = vunpack.c.h.b16 %v253
        %v777 = vunpack.c.l.b16 %v254
        %v778 = vunpack.c.h.b16 %v254
        %v779 = vunpack.c.l.b16 %v255
        %v780 = vunpack.c.h.b16 %v255
        %v781 = vunpack.c.l.b16 %v256
        %v782 = vunpack.c.h.b16 %v256
        %v783 = vunpack.c.l.b16 %v257
        %v784 = vunpack.c.h.b16 %v257
        %v785 = vunpack.c.l.b16 %v258
        %v786 = vunpack.c.h.b16 %v258
        %v787 = vunpack.c.l.b16 %v259
        %v788 = vunpack.c.h.b16 %v259
        %v789 = vunpack.c.l.b16 %v260
        %v790 = vunpack.c.h.b16 %v260
        %v791 = vunpack.c.l.b16 %v261
        %v792 = vunpack.c.h.b16 %v261
        %v793 = vunpack.c.l.b16 %v262
        %v794 = vunpack.c.h.b16 %v262
        %v795 = vunpack.c.l.b16 %v263
        %v796 = vunpack.c.h.b16 %v263
        %v797 = vunpack.c.l.b16 %v264
        %v798 = vunpack.c.h.b16 %v264
        %v799 = vunpack.c.l.b16 %v265
        %v800 = vunpack.c.h.b16 %v265
        %v801 = vunpack.c.l.b16 %v266
        %v802 = vunpack.c.h.b16 %v266
        %v803 = vunpack.c.l.b16 %v267
        %v804 = vunpack.c.h.b16 %v267
        %v805 = vunpack.c.l.b16 %v268
        %v806 = vunpack.c.h.b16 %v268
        %v807 = vunpack.c.l.b16 %v269
        %v808 = vunpack.c.h.b16 %v269
        %v809 = vunpack.c.l.b16 %v270
        %v810 = vunpack.c.h.b16 %v270
        %v811 = vunpack.c.l.b16 %v271
        %v812 = vunpack.c.h.b16 %v271
        %v813 = vunpack.c.l.b16 %v272
        %v814 = vunpack.c.h.b16 %v272
        %v815 = vunpack.c.l.b16 %v273
        %v816 = vunpack.c.h.b16 %v273
        %v817 = vunpack.c.l.b16 %v274
        %v818 = vunpack.c.h.b16 %v274
        %v819 = vunpack.c.l.b16 %v275
        %v820 = vunpack.c.h.b16 %v275
        %v821 = vunpack.c.l.b16 %v276
        %v822 = vunpack.c.h.b16 %v276
        %v823 = vunpack.c.l.b16 %v277
        %v824 = vunpack.c.h.b16 %v277
        %v825 = vunpack.c.l.b16 %v278
        %v826 = vunpack.c.h.b16 %v278
        %v827 = vunpack.c.l.b16 %v279
        %v828 = vunpack.c.h.b16 %v279
        %v829 = vunpack.c.l.b16 %v280
        %v830 = vunpack.c.h.b16 %v280
        %v831 = vunpack.c.l.b16 %v281
        %v832 = vunpack.c.h.b16 %v281
        %v833 = vunpack.c.l.b16 %v282
        %v834 = vunpack.c.h.b16 %v282
        %v835 = vunpack.c.l.b16 %v283
        %v836 = vunpack.c.h.b16 %v283
        %v837 = vunpack.c.l.b16 %v284
        %v838 = vunpack.c.h.b16 %v284
        %v839 = vunpack.c.l.b16 %v285
        %v840 = vunpack.c.h.b16 %v285
        %v841 = vunpack.c.l.b16 %v286
        %v842 = vunpack.c.h.b16 %v286
        %v843 = vunpack.c.l.b16 %v287
        %v844 = vunpack.c.h.b16 %v287
        %v845 = vunpack.c.l.b16 %v288
        %v846 = vunpack.c.h.b16 %v288
        %v847 = vunpack.c.l.b16 %v289
        %v848 = vunpack.c.h.b16 %v289
        %v849 = vunpack.c.l.b16 %v290
        %v850 = vunpack.c.h.b16 %v290
        %v851 = vunpack.c.l.b16 %v291
        %v852 = vunpack.c.h.b16 %v291
        %v853 = vunpack.c.l.b16 %v292
        %v854 = vunpack.c.h.b16 %v292
        %v855 = vunpack.c.l.b16 %v293
        %v856 = vunpack.c.h.b16 %v293
        %v857 = vunpack.c.l.b16 %v294
        %v858 = vunpack.c.h.b16 %v294
        %v859 = vunpack.c.l.b16 %v295
        %v860 = vunpack.c.h.b16 %v295
        %v861 = vunpack.c.l.b16 %v296
        %v862 = vunpack.c.h.b16 %v296
        %v863 = vunpack.c.l.b16 %v297
        %v864 = vunpack.c.h.b16 %v297
        %v865 = vunpack.c.l.b16 %v298
        %v866 = vunpack.c.h.b16 %v298
        %v867 = vunpack.c.l.b16 %v299
        %v868 = vunpack.c.h.b16 %v299
        %v869 = vunpack.c.l.b16 %v300
        %v870 = vunpack.c.h.b16 %v300
        %v871 = vunpack.c.l.b16 %v301
        %v872 = vunpack.c.h.b16 %v301
        %v873 = vunpack.c.l.b16 %v302
        %v874 = vunpack.c.h.b16 %v302
        %v875 = vunpack.c.l.b16 %v303
        %v876 = vunpack.c.h.b16 %v303
        %v877 = vunpack.c.l.b16 %v304
        %v878 = vunpack.c.h.b16 %v304
        %v879 = vunpack.c.l.b16 %v305
        %v880 = vunpack.c.h.b16 %v305
        %v881 = vunpack.c.l.b16 %v306
        %v882 = vunpack.c.h.b16 %v306
        %v883 = vpack.c.b16 %v631, %v627
        %v884 = vpack.c.b16 %v632, %v628
        %v885 = vpack.c.b16 %v633, %v629
        %v886 = vpack.c.b16 %v634, %v630
        %v887 = vpack.c.b16 %v639, %v635
        %v888 = vpack.c.b16 %v640, %v636
        %v889 = vpack.c.b16 %v641, %v637
        %v890 = vpack.c.b16 %v642, %v638
        %v891 = vpack.c.b16 %v647, %v643
        %v892 = vpack.c.b16 %v648, %v644
        %v893 = vpack.c.b16 %v649, %v645
        %v894 = vpack.c.b16 %v650, %v646
        %v895 = vpack.c.b16 %v655, %v651
        %v896 = vpack.c.b16 %v656, %v652
        %v897 = vpack.c.b16 %v657, %v653
        %v898 = vpack.c.b16 %v658, %v654
        %v899 = vpack.c.b16 %v663, %v659
        %v900 = vpack.c.b16 %v664, %v660
        %v901 = vpack.c.b16 %v665, %v661
        %v902 = vpack.c.b16 %v666, %v662
        %v903 = vpack.c.b16 %v671, %v667
        %v904 = vpack.c.b16 %v672, %v668
        %v905 = vpack.c.b16 %v673, %v669
        %v906 = vpack.c.b16 %v674, %v670
        %v907 = vpack.c.b16 %v679, %v675
        %v908 = vpack.c.b16 %v680, %v676
        %v909 = vpack.c.b16 %v681, %v677
        %v910 = vpack.c.b16 %v682, %v678
        %v911 = vpack.c.b16 %v687, %v683
        %v912 = vpack.c.b16 %v688, %v684
        %v913 = vpack.c.b16 %v689, %v685
        %v914 = vpack.c.b16 %v690, %v686
        %v915 = vpack.c.b16 %v695, %v691
        %v916 = vpack.c.b16 %v696, %v692
        %v917 = vpack.c.b16 %v697, %v693
        %v918 = vpack.c.b16 %v698, %v694
        %v919 = vpack.c.b16 %v703, %v699
        %v920 = vpack.c.b16 %v704, %v700
        %v921 = vpack.c.b16 %v705, %v701
        %v922 = vpack.c.b16 %v706, %v702
        %v923 = vpack.c.b16 %v711, %v707
        %v924 = vpack.c.b16 %v712, %v708
        %v925 = vpack.c.b16 %v713, %v709
        %v926 = vpack.c.b16 %v714, %v710
        %v927 = vpack.c.b16 %v719, %v715
        %v928 = vpack.c.b16 %v720, %v716
        %v929 = vpack.c.b16 %v721, %v717
        %v930 = vpack.c.b16 %v722, %v718
        %v931 = vpack.c.b16 %v727, %v723
        %v932 = vpack.c.b16 %v728, %v724
        %v933 = vpack.c.b16 %v729, %v725
        %v934 = vpack.c.b16 %v730, %v726
        %v935 = vpack.c.b16 %v735, %v731
        %v936 = vpack.c.b16 %v736, %v732
        %v937 = vpack.c.b16 %v737, %v733
        %v938 = vpack.c.b16 %v738, %v734
        %v939 = vpack.c.b16 %v743, %v739
        %v940 = vpack.c.b16 %v744, %v740
        %v941 = vpack.c.b16 %v745, %v741
        %v942 = vpack.c.b16 %v746, %v742
        %v943 = vpack.c.b16 %v751, %v747
        %v944 = vpack.c.b16 %v752, %v748
        %v945 = vpack.c.b16 %v753, %v749
        %v946 = vpack.c.b16 %v754, %v750
        %v947 = vpack.c.b16 %v759, %v755
        %v948 = vpack.c.b16 %v760, %v756
        %v949 = vpack.c.b16 %v761, %v757
        %v950 = vpack.c.b16 %v762, %v758
        %v951 = vpack.c.b16 %v767, %v763
        %v952 = vpack.c.b16 %v768, %v764
        %v953 = vpack.c.b16 %v769, %v765
        %v954 = vpack.c.b16 %v770, %v766
        %v955 = vpack.c.b16 %v775, %v771
        %v956 = vpack.c.b16 %v776, %v772
        %v957 = vpack.c.b16 %v777, %v773
        %v958 = vpack.c.b16 %v778, %v774
        %v959 = vpack.c.b16 %v783, %v779
        %v960 = vpack.c.b16 %v784, %v780
        %v961 = vpack.c.b16 %v785, %v781
        %v962 = vpack.c.b16 %v786, %v782
        %v963 = vpack.c.b16 %v791, %v787
        %v964 = vpack.c.b16 %v792, %v788
        %v965 = vpack.c.b16 %v793, %v789
        %v966 = vpack.c.b16 %v794, %v790
        %v967 = vpack.c.b16 %v799, %v795
        %v968 = vpack.c.b16 %v800, %v796
        %v969 = vpack.c.b16 %v801, %v797
        %v970 = vpack.c.b16 %v802, %v798
        %v971 = vpack.c.b16 %v807, %v803
        %v972 = vpack.c.b16 %v808, %v804
        %v973 = vpack.c.b16 %v809, %v805
        %v974 = vpack.c.b16 %v810, %v806
        %v975 = vpack.c.b16 %v815, %v811
        %v976 = vpack.c.b16 %v816, %v812
        %v977 = vpack.c.b16 %v817, %v813
        %v978 = vpack.c.b16 %v818, %v814
        %v979 = vpack.c.b16 %v823, %v819
        %v980 = vpack.c.b16 %v824, %v820
        %v981 = vpack.c.b16 %v825, %v821
        %v982 = vpack.c.b16 %v826, %v822
        %v983 = vpack.c.b16 %v831, %v827
        %v984 = vpack.c.b16 %v832, %v828
        %v985 = vpack.c.b16 %v833, %v829
        %v986 = vpack.c.b16 %v834, %v830
        %v987 = vpack.c.b16 %v839, %v835
        %v988 = vpack.c.b16 %v840, %v836
        %v989 = vpack.c.b16 %v841, %v837
        %v990 = vpack.c.b16 %v842, %v838
        %v991 = vpack.c.b16 %v847, %v843
        %v992 = vpack.c.b16 %v848, %v844
        %v993 = vpack.c.b16 %v849, %v845
        %v994 = vpack.c.b16 %v850, %v846
        %v995 = vpack.c.b16 %v855, %v851
        %v996 = vpack.c.b16 %v856, %v852
        %v997 = vpack.c.b16 %v857, %v853
        %v998 = vpack.c.b16 %v858, %v854
        %v999 = vpack.c.b16 %v863, %v859
        %v1000 = vpack.c.b16 %v864, %v860
        %v1001 = vpack.c.b16 %v865, %v861
        %v1002 = vpack.c.b16 %v866, %v862
        %v1003 = vpack.c.b16 %v871, %v867
        %v1004 = vpack.c.b16 %v872, %v868
        %v1005 = vpack.c.b16 %v873, %v869
        %v1006 = vpack.c.b16 %v874, %v870
        %v1007 = vpack.c.b16 %v879, %v875
        %v1008 = vpack.c.b16 %v880, %v876
        %v1009 = vpack.c.b16 %v881, %v877
        %v1010 = vpack.c.b16 %v882, %v878
        %1139 = vmatprep.subr.bf16.mxu0 %v436
        %1140 = vmatpush1.bf16.msra.mxu0 %v435
        %1141 = vmatprep.subr.bf16.mxu0 %v438
        %1142 = vmatpush1.bf16.msra.mxu0 %v437
        %1143 = vmatprep.subr.bf16.mxu0 %v440
        %1144 = vmatpush1.bf16.msra.mxu0 %v439
        %1145 = vmatprep.subr.bf16.mxu0 %v442
        %1146 = vmatpush1.bf16.msra.mxu0 %v441
        %1147 = vmatprep.subr.bf16.mxu0 %v444
        %1148 = vmatpush1.bf16.msra.mxu0 %v443
        %1149 = vmatprep.subr.bf16.mxu0 %v446
        %1150 = vmatpush1.bf16.msra.mxu0 %v445
        %1151 = vmatprep.subr.bf16.mxu0 %v448
        %1152 = vmatpush1.bf16.msra.mxu0 %v447
        %1153 = vmatprep.subr.bf16.mxu0 %v450
        %1154 = vmatpush1.bf16.msra.mxu0 %v449
        %1155 = vmatprep.subr.bf16.mxu0 %v452
        %1156 = vmatpush1.bf16.msra.mxu0 %v451
        %1157 = vmatprep.subr.bf16.mxu0 %v454
        %1158 = vmatpush1.bf16.msra.mxu0 %v453
        %1159 = vmatprep.subr.bf16.mxu0 %v456
        %1160 = vmatpush1.bf16.msra.mxu0 %v455
        %1161 = vmatprep.subr.bf16.mxu0 %v458
        %1162 = vmatpush1.bf16.msra.mxu0 %v457
        %1163 = vmatprep.subr.bf16.mxu0 %v460
        %1164 = vmatpush1.bf16.msra.mxu0 %v459
        %1165 = vmatprep.subr.bf16.mxu0 %v462
        %1166 = vmatpush1.bf16.msra.mxu0 %v461
        %1167 = vmatprep.subr.bf16.mxu0 %v464
        %1168 = vmatpush1.bf16.msra.mxu0 %v463
        %1169 = vmatprep.subr.bf16.mxu0 %v466
        %1170 = vmatpush1.bf16.msra.mxu0 %v465
        %1171 = vmatprep.mubr.bf16.mxu0 %v884
        %1172 = vmatmul.mubr.bf16.gmra.mrb[0].mxu0 %v883
        %v1173 = vpop.f32.mrb[0].mxu0
        %v1174 = vadd.f32 0.0, %v1173
        %v1175 = vpop.f32.mrb[0].mxu0
        %v1176 = vadd.f32 0.0, %v1175
        %v1177 = vpop.f32.mrb[0].mxu0
        %v1178 = vadd.f32 0.0, %v1177
        %v1179 = vpop.f32.mrb[0].mxu0
        %v1180 = vadd.f32 0.0, %v1179
        %1181 = vmatprep.mubr.bf16.mxu0 %v888
        %1182 = vmatmul.mubr.bf16.gmra.mrb[0].mxu0 %v887
        %v1183 = vpop.f32.mrb[0].mxu0
        %v1184 = vadd.f32 0.0, %v1183
        %v1185 = vpop.f32.mrb[0].mxu0
        %v1186 = vadd.f32 0.0, %v1185
        %v1187 = vpop.f32.mrb[0].mxu0
        %v1188 = vadd.f32 0.0, %v1187
        %v1189 = vpop.f32.mrb[0].mxu0
        %v1190 = vadd.f32 0.0, %v1189
        %1191 = vmatprep.mubr.bf16.mxu0 %v892
        %1192 = vmatmul.mubr.bf16.gmra.mrb[0].mxu0 %v891
        %v1193 = vpop.f32.mrb[0].mxu0
        %v1194 = vadd.f32 0.0, %v1193
        %v1195 = vpop.f32.mrb[0].mxu0
        %v1196 = vadd.f32 0.0, %v1195
        %v1197 = vpop.f32.mrb[0].mxu0
        %v1198 = vadd.f32 0.0, %v1197
        %v1199 = vpop.f32.mrb[0].mxu0
        %v1200 = vadd.f32 0.0, %v1199
        %1201 = vmatprep.mubr.bf16.mxu0 %v896
        %1202 = vmatmul.mubr.bf16.gmra.mrb[0].mxu0 %v895
        %v1203 = vpop.f32.mrb[0].mxu0
        %v1204 = vadd.f32 0.0, %v1203
        %v1205 = vpop.f32.mrb[0].mxu0
        %v1206 = vadd.f32 0.0, %v1205
        %v1207 = vpop.f32.mrb[0].mxu0
        %v1208 = vadd.f32 0.0, %v1207
        %v1209 = vpop.f32.mrb[0].mxu0
        %v1210 = vadd.f32 0.0, %v1209
        %1211 = vmatprep.mubr.bf16.mxu0 %v900
        %1212 = vmatmul.mubr.bf16.gmra.mrb[0].mxu0 %v899
        %v1213 = vpop.f32.mrb[0].mxu0
        %v1214 = vadd.f32 0.0, %v1213
        %v1215 = vpop.f32.mrb[0].mxu0
        %v1216 = vadd.f32 0.0, %v1215
        %v1217 = vpop.f32.mrb[0].mxu0
        %v1218 = vadd.f32 0.0, %v1217
        %v1219 = vpop.f32.mrb[0].mxu0
        %v1220 = vadd.f32 0.0, %v1219
        %1221 = vmatprep.mubr.bf16.mxu0 %v904
        %1222 = vmatmul.mubr.bf16.gmra.mrb[0].mxu0 %v903
        %v1223 = vpop.f32.mrb[0].mxu0
        %v1224 = vadd.f32 0.0, %v1223
        %v1225 = vpop.f32.mrb[0].mxu0
        %v1226 = vadd.f32 0.0, %v1225
        %v1227 = vpop.f32.mrb[0].mxu0
        %v1228 = vadd.f32 0.0, %v1227
        %v1229 = vpop.f32.mrb[0].mxu0
        %v1230 = vadd.f32 0.0, %v1229
        %1231 = vmatprep.mubr.bf16.mxu0 %v908
        %1232 = vmatmul.mubr.bf16.gmra.mrb[0].mxu0 %v907
        %v1233 = vpop.f32.mrb[0].mxu0
        %v1234 = vadd.f32 0.0, %v1233
        %v1235 = vpop.f32.mrb[0].mxu0
        %v1236 = vadd.f32 0.0, %v1235
        %v1237 = vpop.f32.mrb[0].mxu0
        %v1238 = vadd.f32 0.0, %v1237
        %v1239 = vpop.f32.mrb[0].mxu0
        %v1240 = vadd.f32 0.0, %v1239
        %1241 = vmatprep.mubr.bf16.mxu0 %v912
        %1242 = vmatmul.mubr.bf16.gmra.mrb[0].mxu0 %v911
        %v1243 = vpop.f32.mrb[0].mxu0
        %v1244 = vadd.f32 0.0, %v1243
        %v1245 = vpop.f32.mrb[0].mxu0
        %v1246 = vadd.f32 0.0, %v1245
        %v1247 = vpop.f32.mrb[0].mxu0
        %v1248 = vadd.f32 0.0, %v1247
        %v1249 = vpop.f32.mrb[0].mxu0
        %v1250 = vadd.f32 0.0, %v1249
        %1251 = vmatprep.mubr.bf16.mxu0 %v916
        %1252 = vmatmul.mubr.bf16.gmra.mrb[0].mxu0 %v915
        %v1253 = vpop.f32.mrb[0].mxu0
        %v1254 = vadd.f32 0.0, %v1253
        %v1255 = vpop.f32.mrb[0].mxu0
        %v1256 = vadd.f32 0.0, %v1255
        %v1257 = vpop.f32.mrb[0].mxu0
        %v1258 = vadd.f32 0.0, %v1257
        %v1259 = vpop.f32.mrb[0].mxu0
        %v1260 = vadd.f32 0.0, %v1259
        %1261 = vmatprep.mubr.bf16.mxu0 %v920
        %1262 = vmatmul.mubr.bf16.gmra.mrb[0].mxu0 %v919
        %v1263 = vpop.f32.mrb[0].mxu0
        %v1264 = vadd.f32 0.0, %v1263
        %v1265 = vpop.f32.mrb[0].mxu0
        %v1266 = vadd.f32 0.0, %v1265
        %v1267 = vpop.f32.mrb[0].mxu0
        %v1268 = vadd.f32 0.0, %v1267
        %v1269 = vpop.f32.mrb[0].mxu0
        %v1270 = vadd.f32 0.0, %v1269
        %1271 = vmatprep.mubr.bf16.mxu0 %v924
        %1272 = vmatmul.mubr.bf16.gmra.mrb[0].mxu0 %v923
        %v1273 = vpop.f32.mrb[0].mxu0
        %v1274 = vadd.f32 0.0, %v1273
        %v1275 = vpop.f32.mrb[0].mxu0
        %v1276 = vadd.f32 0.0, %v1275
        %v1277 = vpop.f32.mrb[0].mxu0
        %v1278 = vadd.f32 0.0, %v1277
        %v1279 = vpop.f32.mrb[0].mxu0
        %v1280 = vadd.f32 0.0, %v1279
        %1281 = vmatprep.mubr.bf16.mxu0 %v928
        %1282 = vmatmul.mubr.bf16.gmra.mrb[0].mxu0 %v927
        %v1283 = vpop.f32.mrb[0].mxu0
        %v1284 = vadd.f32 0.0, %v1283
        %v1285 = vpop.f32.mrb[0].mxu0
        %v1286 = vadd.f32 0.0, %v1285
        %v1287 = vpop.f32.mrb[0].mxu0
        %v1288 = vadd.f32 0.0, %v1287
        %v1289 = vpop.f32.mrb[0].mxu0
        %v1290 = vadd.f32 0.0, %v1289
        %1291 = vmatprep.mubr.bf16.mxu0 %v932
        %1292 = vmatmul.mubr.bf16.gmra.mrb[0].mxu0 %v931
        %v1293 = vpop.f32.mrb[0].mxu0
        %v1294 = vadd.f32 0.0, %v1293
        %v1295 = vpop.f32.mrb[0].mxu0
        %v1296 = vadd.f32 0.0, %v1295
        %v1297 = vpop.f32.mrb[0].mxu0
        %v1298 = vadd.f32 0.0, %v1297
        %v1299 = vpop.f32.mrb[0].mxu0
        %v1300 = vadd.f32 0.0, %v1299
        %1301 = vmatprep.mubr.bf16.mxu0 %v936
        %1302 = vmatmul.mubr.bf16.gmra.mrb[0].mxu0 %v935
        %v1303 = vpop.f32.mrb[0].mxu0
        %v1304 = vadd.f32 0.0, %v1303
        %v1305 = vpop.f32.mrb[0].mxu0
        %v1306 = vadd.f32 0.0, %v1305
        %v1307 = vpop.f32.mrb[0].mxu0
        %v1308 = vadd.f32 0.0, %v1307
        %v1309 = vpop.f32.mrb[0].mxu0
        %v1310 = vadd.f32 0.0, %v1309
        %1311 = vmatprep.mubr.bf16.mxu0 %v940
        %1312 = vmatmul.mubr.bf16.gmra.mrb[0].mxu0 %v939
        %v1313 = vpop.f32.mrb[0].mxu0
        %v1314 = vadd.f32 0.0, %v1313
        %v1315 = vpop.f32.mrb[0].mxu0
        %v1316 = vadd.f32 0.0, %v1315
        %v1317 = vpop.f32.mrb[0].mxu0
        %v1318 = vadd.f32 0.0, %v1317
        %v1319 = vpop.f32.mrb[0].mxu0
        %v1320 = vadd.f32 0.0, %v1319
        %1321 = vmatprep.mubr.bf16.mxu0 %v944
        %1322 = vmatmul.mubr.bf16.gmra.mrb[0].mxu0 %v943
        %v1323 = vpop.f32.mrb[0].mxu0
        %v1324 = vadd.f32 0.0, %v1323
        %v1325 = vpop.f32.mrb[0].mxu0
        %v1326 = vadd.f32 0.0, %v1325
        %v1327 = vpop.f32.mrb[0].mxu0
        %v1328 = vadd.f32 0.0, %v1327
        %v1329 = vpop.f32.mrb[0].mxu0
        %v1330 = vadd.f32 0.0, %v1329
        %1331 = vmatprep.mubr.bf16.mxu0 %v948
        %1332 = vmatmul.mubr.bf16.gmra.mrb[0].mxu0 %v947
        %v1333 = vpop.f32.mrb[0].mxu0
        %v1334 = vadd.f32 0.0, %v1333
        %v1335 = vpop.f32.mrb[0].mxu0
        %v1336 = vadd.f32 0.0, %v1335
        %v1337 = vpop.f32.mrb[0].mxu0
        %v1338 = vadd.f32 0.0, %v1337
        %v1339 = vpop.f32.mrb[0].mxu0
        %v1340 = vadd.f32 0.0, %v1339
        %1341 = vmatprep.mubr.bf16.mxu0 %v952
        %1342 = vmatmul.mubr.bf16.gmra.mrb[0].mxu0 %v951
        %v1343 = vpop.f32.mrb[0].mxu0
        %v1344 = vadd.f32 0.0, %v1343
        %v1345 = vpop.f32.mrb[0].mxu0
        %v1346 = vadd.f32 0.0, %v1345
        %v1347 = vpop.f32.mrb[0].mxu0
        %v1348 = vadd.f32 0.0, %v1347
        %v1349 = vpop.f32.mrb[0].mxu0
        %v1350 = vadd.f32 0.0, %v1349
        %1351 = vmatprep.mubr.bf16.mxu0 %v956
        %1352 = vmatmul.mubr.bf16.gmra.mrb[0].mxu0 %v955
        %v1353 = vpop.f32.mrb[0].mxu0
        %v1354 = vadd.f32 0.0, %v1353
        %v1355 = vpop.f32.mrb[0].mxu0
        %v1356 = vadd.f32 0.0, %v1355
        %v1357 = vpop.f32.mrb[0].mxu0
        %v1358 = vadd.f32 0.0, %v1357
        %v1359 = vpop.f32.mrb[0].mxu0
        %v1360 = vadd.f32 0.0, %v1359
        %1361 = vmatprep.mubr.bf16.mxu0 %v960
        %1362 = vmatmul.mubr.bf16.gmra.mrb[0].mxu0 %v959
        %v1363 = vpop.f32.mrb[0].mxu0
        %v1364 = vadd.f32 0.0, %v1363
        %v1365 = vpop.f32.mrb[0].mxu0
        %v1366 = vadd.f32 0.0, %v1365
        %v1367 = vpop.f32.mrb[0].mxu0
        %v1368 = vadd.f32 0.0, %v1367
        %v1369 = vpop.f32.mrb[0].mxu0
        %v1370 = vadd.f32 0.0, %v1369
        %1371 = vmatprep.mubr.bf16.mxu0 %v964
        %1372 = vmatmul.mubr.bf16.gmra.mrb[0].mxu0 %v963
        %v1373 = vpop.f32.mrb[0].mxu0
        %v1374 = vadd.f32 0.0, %v1373
        %v1375 = vpop.f32.mrb[0].mxu0
        %v1376 = vadd.f32 0.0, %v1375
        %v1377 = vpop.f32.mrb[0].mxu0
        %v1378 = vadd.f32 0.0, %v1377
        %v1379 = vpop.f32.mrb[0].mxu0
        %v1380 = vadd.f32 0.0, %v1379
        %1381 = vmatprep.mubr.bf16.mxu0 %v968
        %1382 = vmatmul.mubr.bf16.gmra.mrb[0].mxu0 %v967
        %v1383 = vpop.f32.mrb[0].mxu0
        %v1384 = vadd.f32 0.0, %v1383
        %v1385 = vpop.f32.mrb[0].mxu0
        %v1386 = vadd.f32 0.0, %v1385
        %v1387 = vpop.f32.mrb[0].mxu0
        %v1388 = vadd.f32 0.0, %v1387
        %v1389 = vpop.f32.mrb[0].mxu0
        %v1390 = vadd.f32 0.0, %v1389
        %1391 = vmatprep.mubr.bf16.mxu0 %v972
        %1392 = vmatmul.mubr.bf16.gmra.mrb[0].mxu0 %v971
        %v1393 = vpop.f32.mrb[0].mxu0
        %v1394 = vadd.f32 0.0, %v1393
        %v1395 = vpop.f32.mrb[0].mxu0
        %v1396 = vadd.f32 0.0, %v1395
        %v1397 = vpop.f32.mrb[0].mxu0
        %v1398 = vadd.f32 0.0, %v1397
        %v1399 = vpop.f32.mrb[0].mxu0
        %v1400 = vadd.f32 0.0, %v1399
        %1401 = vmatprep.mubr.bf16.mxu0 %v976
        %1402 = vmatmul.mubr.bf16.gmra.mrb[0].mxu0 %v975
        %v1403 = vpop.f32.mrb[0].mxu0
        %v1404 = vadd.f32 0.0, %v1403
        %v1405 = vpop.f32.mrb[0].mxu0
        %v1406 = vadd.f32 0.0, %v1405
        %v1407 = vpop.f32.mrb[0].mxu0
        %v1408 = vadd.f32 0.0, %v1407
        %v1409 = vpop.f32.mrb[0].mxu0
        %v1410 = vadd.f32 0.0, %v1409
        %1411 = vmatprep.mubr.bf16.mxu0 %v980
        %1412 = vmatmul.mubr.bf16.gmra.mrb[0].mxu0 %v979
        %v1413 = vpop.f32.mrb[0].mxu0
        %v1414 = vadd.f32 0.0, %v1413
        %v1415 = vpop.f32.mrb[0].mxu0
        %v1416 = vadd.f32 0.0, %v1415
        %v1417 = vpop.f32.mrb[0].mxu0
        %v1418 = vadd.f32 0.0, %v1417
        %v1419 = vpop.f32.mrb[0].mxu0
        %v1420 = vadd.f32 0.0, %v1419
        %1421 = vmatprep.mubr.bf16.mxu0 %v984
        %1422 = vmatmul.mubr.bf16.gmra.mrb[0].mxu0 %v983
        %v1423 = vpop.f32.mrb[0].mxu0
        %v1424 = vadd.f32 0.0, %v1423
        %v1425 = vpop.f32.mrb[0].mxu0
        %v1426 = vadd.f32 0.0, %v1425
        %v1427 = vpop.f32.mrb[0].mxu0
        %v1428 = vadd.f32 0.0, %v1427
        %v1429 = vpop.f32.mrb[0].mxu0
        %v1430 = vadd.f32 0.0, %v1429
        %1431 = vmatprep.mubr.bf16.mxu0 %v988
        %1432 = vmatmul.mubr.bf16.gmra.mrb[0].mxu0 %v987
        %v1433 = vpop.f32.mrb[0].mxu0
        %v1434 = vadd.f32 0.0, %v1433
        %v1435 = vpop.f32.mrb[0].mxu0
        %v1436 = vadd.f32 0.0, %v1435
        %v1437 = vpop.f32.mrb[0].mxu0
        %v1438 = vadd.f32 0.0, %v1437
        %v1439 = vpop.f32.mrb[0].mxu0
        %v1440 = vadd.f32 0.0, %v1439
        %1441 = vmatprep.mubr.bf16.mxu0 %v992
        %1442 = vmatmul.mubr.bf16.gmra.mrb[0].mxu0 %v991
        %v1443 = vpop.f32.mrb[0].mxu0
        %v1444 = vadd.f32 0.0, %v1443
        %v1445 = vpop.f32.mrb[0].mxu0
        %v1446 = vadd.f32 0.0, %v1445
        %v1447 = vpop.f32.mrb[0].mxu0
        %v1448 = vadd.f32 0.0, %v1447
        %v1449 = vpop.f32.mrb[0].mxu0
        %v1450 = vadd.f32 0.0, %v1449
        %1451 = vmatprep.mubr.bf16.mxu0 %v996
        %1452 = vmatmul.mubr.bf16.gmra.mrb[0].mxu0 %v995
        %v1453 = vpop.f32.mrb[0].mxu0
        %v1454 = vadd.f32 0.0, %v1453
        %v1455 = vpop.f32.mrb[0].mxu0
        %v1456 = vadd.f32 0.0, %v1455
        %v1457 = vpop.f32.mrb[0].mxu0
        %v1458 = vadd.f32 0.0, %v1457
        %v1459 = vpop.f32.mrb[0].mxu0
        %v1460 = vadd.f32 0.0, %v1459
        %1461 = vmatprep.mubr.bf16.mxu0 %v1000
        %1462 = vmatmul.mubr.bf16.gmra.mrb[0].mxu0 %v999
        %v1463 = vpop.f32.mrb[0].mxu0
        %v1464 = vadd.f32 0.0, %v1463
        %v1465 = vpop.f32.mrb[0].mxu0
        %v1466 = vadd.f32 0.0, %v1465
        %v1467 = vpop.f32.mrb[0].mxu0
        %v1468 = vadd.f32 0.0, %v1467
        %v1469 = vpop.f32.mrb[0].mxu0
        %v1470 = vadd.f32 0.0, %v1469
        %1471 = vmatprep.mubr.bf16.mxu0 %v1004
        %1472 = vmatmul.mubr.bf16.gmra.mrb[0].mxu0 %v1003
        %v1473 = vpop.f32.mrb[0].mxu0
        %v1474 = vadd.f32 0.0, %v1473
        %v1475 = vpop.f32.mrb[0].mxu0
        %v1476 = vadd.f32 0.0, %v1475
        %v1477 = vpop.f32.mrb[0].mxu0
        %v1478 = vadd.f32 0.0, %v1477
        %v1479 = vpop.f32.mrb[0].mxu0
        %v1480 = vadd.f32 0.0, %v1479
        %1481 = vmatprep.mubr.bf16.mxu0 %v1008
        %1482 = vmatmul.mubr.bf16.gmra.mrb[0].mxu0 %v1007
        %v1483 = vpop.f32.mrb[0].mxu0
        %v1484 = vadd.f32 0.0, %v1483
        %v1485 = vpop.f32.mrb[0].mxu0
        %v1486 = vadd.f32 0.0, %v1485
        %v1487 = vpop.f32.mrb[0].mxu0
        %v1488 = vadd.f32 0.0, %v1487
        %v1489 = vpop.f32.mrb[0].mxu0
        %v1490 = vadd.f32 0.0, %v1489
        %1491 = vdwg.mxu0
        %1492 = vmatprep.subr.bf16.mxu0 %v468
        %1493 = vmatpush1.bf16.msra.mxu0 %v467
        %1494 = vmatprep.subr.bf16.mxu0 %v470
        %1495 = vmatpush1.bf16.msra.mxu0 %v469
        %1496 = vmatprep.subr.bf16.mxu0 %v472
        %1497 = vmatpush1.bf16.msra.mxu0 %v471
        %1498 = vmatprep.subr.bf16.mxu0 %v474
        %1499 = vmatpush1.bf16.msra.mxu0 %v473
        %1500 = vmatprep.subr.bf16.mxu0 %v476
        %1501 = vmatpush1.bf16.msra.mxu0 %v475
        %1502 = vmatprep.subr.bf16.mxu0 %v478
        %1503 = vmatpush1.bf16.msra.mxu0 %v477
        %1504 = vmatprep.subr.bf16.mxu0 %v480
        %1505 = vmatpush1.bf16.msra.mxu0 %v479
        %1506 = vmatprep.subr.bf16.mxu0 %v482
        %1507 = vmatpush1.bf16.msra.mxu0 %v481
        %1508 = vmatprep.subr.bf16.mxu0 %v484
        %1509 = vmatpush1.bf16.msra.mxu0 %v483
        %1510 = vmatprep.subr.bf16.mxu0 %v486
        %1511 = vmatpush1.bf16.msra.mxu0 %v485
        %1512 = vmatprep.subr.bf16.mxu0 %v488
        %1513 = vmatpush1.bf16.msra.mxu0 %v487
        %1514 = vmatprep.subr.bf16.mxu0 %v490
        %1515 = vmatpush1.bf16.msra.mxu0 %v489
        %1516 = vmatprep.subr.bf16.mxu0 %v492
        %1517 = vmatpush1.bf16.msra.mxu0 %v491
        %1518 = vmatprep.subr.bf16.mxu0 %v494
        %1519 = vmatpush1.bf16.msra.mxu0 %v493
        %1520 = vmatprep.subr.bf16.mxu0 %v496
        %1521 = vmatpush1.bf16.msra.mxu0 %v495
        %1522 = vmatprep.subr.bf16.mxu0 %v498
        %1523 = vmatpush1.bf16.msra.mxu0 %v497
        %1524 = vmatprep.mubr.bf16.mxu0 %v886
        %1525 = vmatmul.mubr.bf16.gmra.mrb[0].mxu0 %v885
        %v1526 = vpop.f32.mrb[0].mxu0
        %v1527 = vadd.f32 %v1174, %v1526
        %v1528 = vpop.f32.mrb[0].mxu0
        %v1529 = vadd.f32 %v1176, %v1528
        %v1530 = vpop.f32.mrb[0].mxu0
        %v1531 = vadd.f32 %v1178, %v1530
        %v1532 = vpop.f32.mrb[0].mxu0
        %v1533 = vadd.f32 %v1180, %v1532
        %1534 = vmatprep.mubr.bf16.mxu0 %v890
        %1535 = vmatmul.mubr.bf16.gmra.mrb[0].mxu0 %v889
        %v1536 = vpop.f32.mrb[0].mxu0
        %v1537 = vadd.f32 %v1184, %v1536
        %v1538 = vpop.f32.mrb[0].mxu0
        %v1539 = vadd.f32 %v1186, %v1538
        %v1540 = vpop.f32.mrb[0].mxu0
        %v1541 = vadd.f32 %v1188, %v1540
        %v1542 = vpop.f32.mrb[0].mxu0
        %v1543 = vadd.f32 %v1190, %v1542
        %1544 = vmatprep.mubr.bf16.mxu0 %v894
        %1545 = vmatmul.mubr.bf16.gmra.mrb[0].mxu0 %v893
        %v1546 = vpop.f32.mrb[0].mxu0
        %v1547 = vadd.f32 %v1194, %v1546
        %v1548 = vpop.f32.mrb[0].mxu0
        %v1549 = vadd.f32 %v1196, %v1548
        %v1550 = vpop.f32.mrb[0].mxu0
        %v1551 = vadd.f32 %v1198, %v1550
        %v1552 = vpop.f32.mrb[0].mxu0
        %v1553 = vadd.f32 %v1200, %v1552
        %1554 = vmatprep.mubr.bf16.mxu0 %v898
        %1555 = vmatmul.mubr.bf16.gmra.mrb[0].mxu0 %v897
        %v1556 = vpop.f32.mrb[0].mxu0
        %v1557 = vadd.f32 %v1204, %v1556
        %v1558 = vpop.f32.mrb[0].mxu0
        %v1559 = vadd.f32 %v1206, %v1558
        %v1560 = vpop.f32.mrb[0].mxu0
        %v1561 = vadd.f32 %v1208, %v1560
        %v1562 = vpop.f32.mrb[0].mxu0
        %v1563 = vadd.f32 %v1210, %v1562
        %1564 = vmatprep.mubr.bf16.mxu0 %v902
        %1565 = vmatmul.mubr.bf16.gmra.mrb[0].mxu0 %v901
        %v1566 = vpop.f32.mrb[0].mxu0
        %v1567 = vadd.f32 %v1214, %v1566
        %v1568 = vpop.f32.mrb[0].mxu0
        %v1569 = vadd.f32 %v1216, %v1568
        %v1570 = vpop.f32.mrb[0].mxu0
        %v1571 = vadd.f32 %v1218, %v1570
        %v1572 = vpop.f32.mrb[0].mxu0
        %v1573 = vadd.f32 %v1220, %v1572
        %1574 = vmatprep.mubr.bf16.mxu0 %v906
        %1575 = vmatmul.mubr.bf16.gmra.mrb[0].mxu0 %v905
        %v1576 = vpop.f32.mrb[0].mxu0
        %v1577 = vadd.f32 %v1224, %v1576
        %v1578 = vpop.f32.mrb[0].mxu0
        %v1579 = vadd.f32 %v1226, %v1578
        %v1580 = vpop.f32.mrb[0].mxu0
        %v1581 = vadd.f32 %v1228, %v1580
        %v1582 = vpop.f32.mrb[0].mxu0
        %v1583 = vadd.f32 %v1230, %v1582
        %1584 = vmatprep.mubr.bf16.mxu0 %v910
        %1585 = vmatmul.mubr.bf16.gmra.mrb[0].mxu0 %v909
        %v1586 = vpop.f32.mrb[0].mxu0
        %v1587 = vadd.f32 %v1234, %v1586
        %v1588 = vpop.f32.mrb[0].mxu0
        %v1589 = vadd.f32 %v1236, %v1588
        %v1590 = vpop.f32.mrb[0].mxu0
        %v1591 = vadd.f32 %v1238, %v1590
        %v1592 = vpop.f32.mrb[0].mxu0
        %v1593 = vadd.f32 %v1240, %v1592
        %1594 = vmatprep.mubr.bf16.mxu0 %v914
        %1595 = vmatmul.mubr.bf16.gmra.mrb[0].mxu0 %v913
        %v1596 = vpop.f32.mrb[0].mxu0
        %v1597 = vadd.f32 %v1244, %v1596
        %v1598 = vpop.f32.mrb[0].mxu0
        %v1599 = vadd.f32 %v1246, %v1598
        %v1600 = vpop.f32.mrb[0].mxu0
        %v1601 = vadd.f32 %v1248, %v1600
        %v1602 = vpop.f32.mrb[0].mxu0
        %v1603 = vadd.f32 %v1250, %v1602
        %1604 = vmatprep.mubr.bf16.mxu0 %v918
        %1605 = vmatmul.mubr.bf16.gmra.mrb[0].mxu0 %v917
        %v1606 = vpop.f32.mrb[0].mxu0
        %v1607 = vadd.f32 %v1254, %v1606
        %v1608 = vpop.f32.mrb[0].mxu0
        %v1609 = vadd.f32 %v1256, %v1608
        %v1610 = vpop.f32.mrb[0].mxu0
        %v1611 = vadd.f32 %v1258, %v1610
        %v1612 = vpop.f32.mrb[0].mxu0
        %v1613 = vadd.f32 %v1260, %v1612
        %1614 = vmatprep.mubr.bf16.mxu0 %v922
        %1615 = vmatmul.mubr.bf16.gmra.mrb[0].mxu0 %v921
        %v1616 = vpop.f32.mrb[0].mxu0
        %v1617 = vadd.f32 %v1264, %v1616
        %v1618 = vpop.f32.mrb[0].mxu0
        %v1619 = vadd.f32 %v1266, %v1618
        %v1620 = vpop.f32.mrb[0].mxu0
        %v1621 = vadd.f32 %v1268, %v1620
        %v1622 = vpop.f32.mrb[0].mxu0
        %v1623 = vadd.f32 %v1270, %v1622
        %1624 = vmatprep.mubr.bf16.mxu0 %v926
        %1625 = vmatmul.mubr.bf16.gmra.mrb[0].mxu0 %v925
        %v1626 = vpop.f32.mrb[0].mxu0
        %v1627 = vadd.f32 %v1274, %v1626
        %v1628 = vpop.f32.mrb[0].mxu0
        %v1629 = vadd.f32 %v1276, %v1628
        %v1630 = vpop.f32.mrb[0].mxu0
        %v1631 = vadd.f32 %v1278, %v1630
        %v1632 = vpop.f32.mrb[0].mxu0
        %v1633 = vadd.f32 %v1280, %v1632
        %1634 = vmatprep.mubr.bf16.mxu0 %v930
        %1635 = vmatmul.mubr.bf16.gmra.mrb[0].mxu0 %v929
        %v1636 = vpop.f32.mrb[0].mxu0
        %v1637 = vadd.f32 %v1284, %v1636
        %v1638 = vpop.f32.mrb[0].mxu0
        %v1639 = vadd.f32 %v1286, %v1638
        %v1640 = vpop.f32.mrb[0].mxu0
        %v1641 = vadd.f32 %v1288, %v1640
        %v1642 = vpop.f32.mrb[0].mxu0
        %v1643 = vadd.f32 %v1290, %v1642
        %1644 = vmatprep.mubr.bf16.mxu0 %v934
        %1645 = vmatmul.mubr.bf16.gmra.mrb[0].mxu0 %v933
        %v1646 = vpop.f32.mrb[0].mxu0
        %v1647 = vadd.f32 %v1294, %v1646
        %v1648 = vpop.f32.mrb[0].mxu0
        %v1649 = vadd.f32 %v1296, %v1648
        %v1650 = vpop.f32.mrb[0].mxu0
        %v1651 = vadd.f32 %v1298, %v1650
        %v1652 = vpop.f32.mrb[0].mxu0
        %v1653 = vadd.f32 %v1300, %v1652
        %1654 = vmatprep.mubr.bf16.mxu0 %v938
        %1655 = vmatmul.mubr.bf16.gmra.mrb[0].mxu0 %v937
        %v1656 = vpop.f32.mrb[0].mxu0
        %v1657 = vadd.f32 %v1304, %v1656
        %v1658 = vpop.f32.mrb[0].mxu0
        %v1659 = vadd.f32 %v1306, %v1658
        %v1660 = vpop.f32.mrb[0].mxu0
        %v1661 = vadd.f32 %v1308, %v1660
        %v1662 = vpop.f32.mrb[0].mxu0
        %v1663 = vadd.f32 %v1310, %v1662
        %1664 = vmatprep.mubr.bf16.mxu0 %v942
        %1665 = vmatmul.mubr.bf16.gmra.mrb[0].mxu0 %v941
        %v1666 = vpop.f32.mrb[0].mxu0
        %v1667 = vadd.f32 %v1314, %v1666
        %v1668 = vpop.f32.mrb[0].mxu0
        %v1669 = vadd.f32 %v1316, %v1668
        %v1670 = vpop.f32.mrb[0].mxu0
        %v1671 = vadd.f32 %v1318, %v1670
        %v1672 = vpop.f32.mrb[0].mxu0
        %v1673 = vadd.f32 %v1320, %v1672
        %1674 = vmatprep.mubr.bf16.mxu0 %v946
        %1675 = vmatmul.mubr.bf16.gmra.mrb[0].mxu0 %v945
        %v1676 = vpop.f32.mrb[0].mxu0
        %v1677 = vadd.f32 %v1324, %v1676
        %v1678 = vpop.f32.mrb[0].mxu0
        %v1679 = vadd.f32 %v1326, %v1678
        %v1680 = vpop.f32.mrb[0].mxu0
        %v1681 = vadd.f32 %v1328, %v1680
        %v1682 = vpop.f32.mrb[0].mxu0
        %v1683 = vadd.f32 %v1330, %v1682
        %1684 = vmatprep.mubr.bf16.mxu0 %v950
        %1685 = vmatmul.mubr.bf16.gmra.mrb[0].mxu0 %v949
        %v1686 = vpop.f32.mrb[0].mxu0
        %v1687 = vadd.f32 %v1334, %v1686
        %v1688 = vpop.f32.mrb[0].mxu0
        %v1689 = vadd.f32 %v1336, %v1688
        %v1690 = vpop.f32.mrb[0].mxu0
        %v1691 = vadd.f32 %v1338, %v1690
        %v1692 = vpop.f32.mrb[0].mxu0
        %v1693 = vadd.f32 %v1340, %v1692
        %1694 = vmatprep.mubr.bf16.mxu0 %v954
        %1695 = vmatmul.mubr.bf16.gmra.mrb[0].mxu0 %v953
        %v1696 = vpop.f32.mrb[0].mxu0
        %v1697 = vadd.f32 %v1344, %v1696
        %v1698 = vpop.f32.mrb[0].mxu0
        %v1699 = vadd.f32 %v1346, %v1698
        %v1700 = vpop.f32.mrb[0].mxu0
        %v1701 = vadd.f32 %v1348, %v1700
        %v1702 = vpop.f32.mrb[0].mxu0
        %v1703 = vadd.f32 %v1350, %v1702
        %1704 = vmatprep.mubr.bf16.mxu0 %v958
        %1705 = vmatmul.mubr.bf16.gmra.mrb[0].mxu0 %v957
        %v1706 = vpop.f32.mrb[0].mxu0
        %v1707 = vadd.f32 %v1354, %v1706
        %v1708 = vpop.f32.mrb[0].mxu0
        %v1709 = vadd.f32 %v1356, %v1708
        %v1710 = vpop.f32.mrb[0].mxu0
        %v1711 = vadd.f32 %v1358, %v1710
        %v1712 = vpop.f32.mrb[0].mxu0
        %v1713 = vadd.f32 %v1360, %v1712
        %1714 = vmatprep.mubr.bf16.mxu0 %v962
        %1715 = vmatmul.mubr.bf16.gmra.mrb[0].mxu0 %v961
        %v1716 = vpop.f32.mrb[0].mxu0
        %v1717 = vadd.f32 %v1364, %v1716
        %v1718 = vpop.f32.mrb[0].mxu0
        %v1719 = vadd.f32 %v1366, %v1718
        %v1720 = vpop.f32.mrb[0].mxu0
        %v1721 = vadd.f32 %v1368, %v1720
        %v1722 = vpop.f32.mrb[0].mxu0
        %v1723 = vadd.f32 %v1370, %v1722
        %1724 = vmatprep.mubr.bf16.mxu0 %v966
        %1725 = vmatmul.mubr.bf16.gmra.mrb[0].mxu0 %v965
        %v1726 = vpop.f32.mrb[0].mxu0
        %v1727 = vadd.f32 %v1374, %v1726
        %v1728 = vpop.f32.mrb[0].mxu0
        %v1729 = vadd.f32 %v1376, %v1728
        %v1730 = vpop.f32.mrb[0].mxu0
        %v1731 = vadd.f32 %v1378, %v1730
        %v1732 = vpop.f32.mrb[0].mxu0
        %v1733 = vadd.f32 %v1380, %v1732
        %1734 = vmatprep.mubr.bf16.mxu0 %v970
        %1735 = vmatmul.mubr.bf16.gmra.mrb[0].mxu0 %v969
        %v1736 = vpop.f32.mrb[0].mxu0
        %v1737 = vadd.f32 %v1384, %v1736
        %v1738 = vpop.f32.mrb[0].mxu0
        %v1739 = vadd.f32 %v1386, %v1738
        %v1740 = vpop.f32.mrb[0].mxu0
        %v1741 = vadd.f32 %v1388, %v1740
        %v1742 = vpop.f32.mrb[0].mxu0
        %v1743 = vadd.f32 %v1390, %v1742
        %1744 = vmatprep.mubr.bf16.mxu0 %v974
        %1745 = vmatmul.mubr.bf16.gmra.mrb[0].mxu0 %v973
        %v1746 = vpop.f32.mrb[0].mxu0
        %v1747 = vadd.f32 %v1394, %v1746
        %v1748 = vpop.f32.mrb[0].mxu0
        %v1749 = vadd.f32 %v1396, %v1748
        %v1750 = vpop.f32.mrb[0].mxu0
        %v1751 = vadd.f32 %v1398, %v1750
        %v1752 = vpop.f32.mrb[0].mxu0
        %v1753 = vadd.f32 %v1400, %v1752
        %1754 = vmatprep.mubr.bf16.mxu0 %v978
        %1755 = vmatmul.mubr.bf16.gmra.mrb[0].mxu0 %v977
        %v1756 = vpop.f32.mrb[0].mxu0
        %v1757 = vadd.f32 %v1404, %v1756
        %v1758 = vpop.f32.mrb[0].mxu0
        %v1759 = vadd.f32 %v1406, %v1758
        %v1760 = vpop.f32.mrb[0].mxu0
        %v1761 = vadd.f32 %v1408, %v1760
        %v1762 = vpop.f32.mrb[0].mxu0
        %v1763 = vadd.f32 %v1410, %v1762
        %1764 = vmatprep.mubr.bf16.mxu0 %v982
        %1765 = vmatmul.mubr.bf16.gmra.mrb[0].mxu0 %v981
        %v1766 = vpop.f32.mrb[0].mxu0
        %v1767 = vadd.f32 %v1414, %v1766
        %v1768 = vpop.f32.mrb[0].mxu0
        %v1769 = vadd.f32 %v1416, %v1768
        %v1770 = vpop.f32.mrb[0].mxu0
        %v1771 = vadd.f32 %v1418, %v1770
        %v1772 = vpop.f32.mrb[0].mxu0
        %v1773 = vadd.f32 %v1420, %v1772
        %1774 = vmatprep.mubr.bf16.mxu0 %v986
        %1775 = vmatmul.mubr.bf16.gmra.mrb[0].mxu0 %v985
        %v1776 = vpop.f32.mrb[0].mxu0
        %v1777 = vadd.f32 %v1424, %v1776
        %v1778 = vpop.f32.mrb[0].mxu0
        %v1779 = vadd.f32 %v1426, %v1778
        %v1780 = vpop.f32.mrb[0].mxu0
        %v1781 = vadd.f32 %v1428, %v1780
        %v1782 = vpop.f32.mrb[0].mxu0
        %v1783 = vadd.f32 %v1430, %v1782
        %1784 = vmatprep.mubr.bf16.mxu0 %v990
        %1785 = vmatmul.mubr.bf16.gmra.mrb[0].mxu0 %v989
        %v1786 = vpop.f32.mrb[0].mxu0
        %v1787 = vadd.f32 %v1434, %v1786
        %v1788 = vpop.f32.mrb[0].mxu0
        %v1789 = vadd.f32 %v1436, %v1788
        %v1790 = vpop.f32.mrb[0].mxu0
        %v1791 = vadd.f32 %v1438, %v1790
        %v1792 = vpop.f32.mrb[0].mxu0
        %v1793 = vadd.f32 %v1440, %v1792
        %1794 = vmatprep.mubr.bf16.mxu0 %v994
        %1795 = vmatmul.mubr.bf16.gmra.mrb[0].mxu0 %v993
        %v1796 = vpop.f32.mrb[0].mxu0
        %v1797 = vadd.f32 %v1444, %v1796
        %v1798 = vpop.f32.mrb[0].mxu0
        %v1799 = vadd.f32 %v1446, %v1798
        %v1800 = vpop.f32.mrb[0].mxu0
        %v1801 = vadd.f32 %v1448, %v1800
        %v1802 = vpop.f32.mrb[0].mxu0
        %v1803 = vadd.f32 %v1450, %v1802
        %1804 = vmatprep.mubr.bf16.mxu0 %v998
        %1805 = vmatmul.mubr.bf16.gmra.mrb[0].mxu0 %v997
        %v1806 = vpop.f32.mrb[0].mxu0
        %v1807 = vadd.f32 %v1454, %v1806
        %v1808 = vpop.f32.mrb[0].mxu0
        %v1809 = vadd.f32 %v1456, %v1808
        %v1810 = vpop.f32.mrb[0].mxu0
        %v1811 = vadd.f32 %v1458, %v1810
        %v1812 = vpop.f32.mrb[0].mxu0
        %v1813 = vadd.f32 %v1460, %v1812
        %1814 = vmatprep.mubr.bf16.mxu0 %v1002
        %1815 = vmatmul.mubr.bf16.gmra.mrb[0].mxu0 %v1001
        %v1816 = vpop.f32.mrb[0].mxu0
        %v1817 = vadd.f32 %v1464, %v1816
        %v1818 = vpop.f32.mrb[0].mxu0
        %v1819 = vadd.f32 %v1466, %v1818
        %v1820 = vpop.f32.mrb[0].mxu0
        %v1821 = vadd.f32 %v1468, %v1820
        %v1822 = vpop.f32.mrb[0].mxu0
        %v1823 = vadd.f32 %v1470, %v1822
        %1824 = vmatprep.mubr.bf16.mxu0 %v1006
        %1825 = vmatmul.mubr.bf16.gmra.mrb[0].mxu0 %v1005
        %v1826 = vpop.f32.mrb[0].mxu0
        %v1827 = vadd.f32 %v1474, %v1826
        %v1828 = vpop.f32.mrb[0].mxu0
        %v1829 = vadd.f32 %v1476, %v1828
        %v1830 = vpop.f32.mrb[0].mxu0
        %v1831 = vadd.f32 %v1478, %v1830
        %v1832 = vpop.f32.mrb[0].mxu0
        %v1833 = vadd.f32 %v1480, %v1832
        %1834 = vmatprep.mubr.bf16.mxu0 %v1010
        %1835 = vmatmul.mubr.bf16.gmra.mrb[0].mxu0 %v1009
        %v1836 = vpop.f32.mrb[0].mxu0
        %v1837 = vadd.f32 %v1484, %v1836
        %v1838 = vpop.f32.mrb[0].mxu0
        %v1839 = vadd.f32 %v1486, %v1838
        %v1840 = vpop.f32.mrb[0].mxu0
        %v1841 = vadd.f32 %v1488, %v1840
        %v1842 = vpop.f32.mrb[0].mxu0
        %v1843 = vadd.f32 %v1490, %v1842
        %1844 = vdwg.mxu0
        %v1845 = vpack.c.bf16 %v1531, %v1527
        %v1846 = vpack.c.bf16 %v1533, %v1529
        %v1847 = vpack.c.bf16 %v1541, %v1537
        %v1848 = vpack.c.bf16 %v1543, %v1539
        %v1849 = vpack.c.bf16 %v1551, %v1547
        %v1850 = vpack.c.bf16 %v1553, %v1549
        %v1851 = vpack.c.bf16 %v1561, %v1557
        %v1852 = vpack.c.bf16 %v1563, %v1559
        %v1853 = vpack.c.bf16 %v1571, %v1567
        %v1854 = vpack.c.bf16 %v1573, %v1569
        %v1855 = vpack.c.bf16 %v1581, %v1577
        %v1856 = vpack.c.bf16 %v1583, %v1579
        %v1857 = vpack.c.bf16 %v1591, %v1587
        %v1858 = vpack.c.bf16 %v1593, %v1589
        %v1859 = vpack.c.bf16 %v1601, %v1597
        %v1860 = vpack.c.bf16 %v1603, %v1599
        %v1861 = vpack.c.bf16 %v1611, %v1607
        %v1862 = vpack.c.bf16 %v1613, %v1609
        %v1863 = vpack.c.bf16 %v1621, %v1617
        %v1864 = vpack.c.bf16 %v1623, %v1619
        %v1865 = vpack.c.bf16 %v1631, %v1627
        %v1866 = vpack.c.bf16 %v1633, %v1629
        %v1867 = vpack.c.bf16 %v1641, %v1637
        %v1868 = vpack.c.bf16 %v1643, %v1639
        %v1869 = vpack.c.bf16 %v1651, %v1647
        %v1870 = vpack.c.bf16 %v1653, %v1649
        %v1871 = vpack.c.bf16 %v1661, %v1657
        %v1872 = vpack.c.bf16 %v1663, %v1659
        %v1873 = vpack.c.bf16 %v1671, %v1667
        %v1874 = vpack.c.bf16 %v1673, %v1669
        %v1875 = vpack.c.bf16 %v1681, %v1677
        %v1876 = vpack.c.bf16 %v1683, %v1679
        %v1877 = vpack.c.bf16 %v1691, %v1687
        %v1878 = vpack.c.bf16 %v1693, %v1689
        %v1879 = vpack.c.bf16 %v1701, %v1697
        %v1880 = vpack.c.bf16 %v1703, %v1699
        %v1881 = vpack.c.bf16 %v1711, %v1707
        %v1882 = vpack.c.bf16 %v1713, %v1709
        %v1883 = vpack.c.bf16 %v1721, %v1717
        %v1884 = vpack.c.bf16 %v1723, %v1719
        %v1885 = vpack.c.bf16 %v1731, %v1727
        %v1886 = vpack.c.bf16 %v1733, %v1729
        %v1887 = vpack.c.bf16 %v1741, %v1737
        %v1888 = vpack.c.bf16 %v1743, %v1739
        %v1889 = vpack.c.bf16 %v1751, %v1747
        %v1890 = vpack.c.bf16 %v1753, %v1749
        %v1891 = vpack.c.bf16 %v1761, %v1757
        %v1892 = vpack.c.bf16 %v1763, %v1759
        %v1893 = vpack.c.bf16 %v1771, %v1767
        %v1894 = vpack.c.bf16 %v1773, %v1769
        %v1895 = vpack.c.bf16 %v1781, %v1777
        %v1896 = vpack.c.bf16 %v1783, %v1779
        %v1897 = vpack.c.bf16 %v1791, %v1787
        %v1898 = vpack.c.bf16 %v1793, %v1789
        %v1899 = vpack.c.bf16 %v1801, %v1797
        %v1900 = vpack.c.bf16 %v1803, %v1799
        %v1901 = vpack.c.bf16 %v1811, %v1807
        %v1902 = vpack.c.bf16 %v1813, %v1809
        %v1903 = vpack.c.bf16 %v1821, %v1817
        %v1904 = vpack.c.bf16 %v1823, %v1819
        %v1905 = vpack.c.bf16 %v1831, %v1827
        %v1906 = vpack.c.bf16 %v1833, %v1829
        %v1907 = vpack.c.bf16 %v1841, %v1837
        %v1908 = vpack.c.bf16 %v1843, %v1839
        %1909 = vmatprep.subr.bf16.mxu0 %v1846
        %1910 = vmatpush1.bf16.msra.mxu0 %v1845
        %1911 = vmatprep.subr.bf16.mxu0 %v1848
        %1912 = vmatpush1.bf16.msra.mxu0 %v1847
        %1913 = vmatprep.subr.bf16.mxu0 %v1850
        %1914 = vmatpush1.bf16.msra.mxu0 %v1849
        %1915 = vmatprep.subr.bf16.mxu0 %v1852
        %1916 = vmatpush1.bf16.msra.mxu0 %v1851
        %1917 = vmatprep.subr.bf16.mxu0 %v1854
        %1918 = vmatpush1.bf16.msra.mxu0 %v1853
        %1919 = vmatprep.subr.bf16.mxu0 %v1856
        %1920 = vmatpush1.bf16.msra.mxu0 %v1855
        %1921 = vmatprep.subr.bf16.mxu0 %v1858
        %1922 = vmatpush1.bf16.msra.mxu0 %v1857
        %1923 = vmatprep.subr.bf16.mxu0 %v1860
        %1924 = vmatpush1.bf16.msra.mxu0 %v1859
        %1925 = vmatprep.subr.bf16.mxu0 %v1862
        %1926 = vmatpush1.bf16.msra.mxu0 %v1861
        %1927 = vmatprep.subr.bf16.mxu0 %v1864
        %1928 = vmatpush1.bf16.msra.mxu0 %v1863
        %1929 = vmatprep.subr.bf16.mxu0 %v1866
        %1930 = vmatpush1.bf16.msra.mxu0 %v1865
        %1931 = vmatprep.subr.bf16.mxu0 %v1868
        %1932 = vmatpush1.bf16.msra.mxu0 %v1867
        %1933 = vmatprep.subr.bf16.mxu0 %v1870
        %1934 = vmatpush1.bf16.msra.mxu0 %v1869
        %1935 = vmatprep.subr.bf16.mxu0 %v1872
        %1936 = vmatpush1.bf16.msra.mxu0 %v1871
        %1937 = vmatprep.subr.bf16.mxu0 %v1874
        %1938 = vmatpush1.bf16.msra.mxu0 %v1873
        %1939 = vmatprep.subr.bf16.mxu0 %v1876
        %1940 = vmatpush1.bf16.msra.mxu0 %v1875
        %1941 = vmatprep.mubr.bf16.mxu0 %v884
        %1942 = vmatmul.mubr.bf16.gmra.mrb[0].mxu0 %v883
        %v1943 = vpop.f32.mrb[0].mxu0
        %v1944 = vadd.f32 0.0, %v1943
        %v1945 = vpop.f32.mrb[0].mxu0
        %v1946 = vadd.f32 0.0, %v1945
        %v1947 = vpop.f32.mrb[0].mxu0
        %v1948 = vadd.f32 0.0, %v1947
        %v1949 = vpop.f32.mrb[0].mxu0
        %v1950 = vadd.f32 0.0, %v1949
        %1951 = vmatprep.mubr.bf16.mxu0 %v888
        %1952 = vmatmul.mubr.bf16.gmra.mrb[0].mxu0 %v887
        %v1953 = vpop.f32.mrb[0].mxu0
        %v1954 = vadd.f32 0.0, %v1953
        %v1955 = vpop.f32.mrb[0].mxu0
        %v1956 = vadd.f32 0.0, %v1955
        %v1957 = vpop.f32.mrb[0].mxu0
        %v1958 = vadd.f32 0.0, %v1957
        %v1959 = vpop.f32.mrb[0].mxu0
        %v1960 = vadd.f32 0.0, %v1959
        %1961 = vmatprep.mubr.bf16.mxu0 %v892
        %1962 = vmatmul.mubr.bf16.gmra.mrb[0].mxu0 %v891
        %v1963 = vpop.f32.mrb[0].mxu0
        %v1964 = vadd.f32 0.0, %v1963
        %v1965 = vpop.f32.mrb[0].mxu0
        %v1966 = vadd.f32 0.0, %v1965
        %v1967 = vpop.f32.mrb[0].mxu0
        %v1968 = vadd.f32 0.0, %v1967
        %v1969 = vpop.f32.mrb[0].mxu0
        %v1970 = vadd.f32 0.0, %v1969
        %1971 = vmatprep.mubr.bf16.mxu0 %v896
        %1972 = vmatmul.mubr.bf16.gmra.mrb[0].mxu0 %v895
        %v1973 = vpop.f32.mrb[0].mxu0
        %v1974 = vadd.f32 0.0, %v1973
        %v1975 = vpop.f32.mrb[0].mxu0
        %v1976 = vadd.f32 0.0, %v1975
        %v1977 = vpop.f32.mrb[0].mxu0
        %v1978 = vadd.f32 0.0, %v1977
        %v1979 = vpop.f32.mrb[0].mxu0
        %v1980 = vadd.f32 0.0, %v1979
        %1981 = vmatprep.mubr.bf16.mxu0 %v900
        %1982 = vmatmul.mubr.bf16.gmra.mrb[0].mxu0 %v899
        %v1983 = vpop.f32.mrb[0].mxu0
        %v1984 = vadd.f32 0.0, %v1983
        %v1985 = vpop.f32.mrb[0].mxu0
        %v1986 = vadd.f32 0.0, %v1985
        %v1987 = vpop.f32.mrb[0].mxu0
        %v1988 = vadd.f32 0.0, %v1987
        %v1989 = vpop.f32.mrb[0].mxu0
        %v1990 = vadd.f32 0.0, %v1989
        %1991 = vmatprep.mubr.bf16.mxu0 %v904
        %1992 = vmatmul.mubr.bf16.gmra.mrb[0].mxu0 %v903
        %v1993 = vpop.f32.mrb[0].mxu0
        %v1994 = vadd.f32 0.0, %v1993
        %v1995 = vpop.f32.mrb[0].mxu0
        %v1996 = vadd.f32 0.0, %v1995
        %v1997 = vpop.f32.mrb[0].mxu0
        %v1998 = vadd.f32 0.0, %v1997
        %v1999 = vpop.f32.mrb[0].mxu0
        %v2000 = vadd.f32 0.0, %v1999
        %2001 = vmatprep.mubr.bf16.mxu0 %v908
        %2002 = vmatmul.mubr.bf16.gmra.mrb[0].mxu0 %v907
        %v2003 = vpop.f32.mrb[0].mxu0
        %v2004 = vadd.f32 0.0, %v2003
        %v2005 = vpop.f32.mrb[0].mxu0
        %v2006 = vadd.f32 0.0, %v2005
        %v2007 = vpop.f32.mrb[0].mxu0
        %v2008 = vadd.f32 0.0, %v2007
        %v2009 = vpop.f32.mrb[0].mxu0
        %v2010 = vadd.f32 0.0, %v2009
        %2011 = vmatprep.mubr.bf16.mxu0 %v912
        %2012 = vmatmul.mubr.bf16.gmra.mrb[0].mxu0 %v911
        %v2013 = vpop.f32.mrb[0].mxu0
        %v2014 = vadd.f32 0.0, %v2013
        %v2015 = vpop.f32.mrb[0].mxu0
        %v2016 = vadd.f32 0.0, %v2015
        %v2017 = vpop.f32.mrb[0].mxu0
        %v2018 = vadd.f32 0.0, %v2017
        %v2019 = vpop.f32.mrb[0].mxu0
        %v2020 = vadd.f32 0.0, %v2019
        %2021 = vmatprep.mubr.bf16.mxu0 %v916
        %2022 = vmatmul.mubr.bf16.gmra.mrb[0].mxu0 %v915
        %v2023 = vpop.f32.mrb[0].mxu0
        %v2024 = vadd.f32 0.0, %v2023
        %v2025 = vpop.f32.mrb[0].mxu0
        %v2026 = vadd.f32 0.0, %v2025
        %v2027 = vpop.f32.mrb[0].mxu0
        %v2028 = vadd.f32 0.0, %v2027
        %v2029 = vpop.f32.mrb[0].mxu0
        %v2030 = vadd.f32 0.0, %v2029
        %2031 = vmatprep.mubr.bf16.mxu0 %v920
        %2032 = vmatmul.mubr.bf16.gmra.mrb[0].mxu0 %v919
        %v2033 = vpop.f32.mrb[0].mxu0
        %v2034 = vadd.f32 0.0, %v2033
        %v2035 = vpop.f32.mrb[0].mxu0
        %v2036 = vadd.f32 0.0, %v2035
        %v2037 = vpop.f32.mrb[0].mxu0
        %v2038 = vadd.f32 0.0, %v2037
        %v2039 = vpop.f32.mrb[0].mxu0
        %v2040 = vadd.f32 0.0, %v2039
        %2041 = vmatprep.mubr.bf16.mxu0 %v924
        %2042 = vmatmul.mubr.bf16.gmra.mrb[0].mxu0 %v923
        %v2043 = vpop.f32.mrb[0].mxu0
        %v2044 = vadd.f32 0.0, %v2043
        %v2045 = vpop.f32.mrb[0].mxu0
        %v2046 = vadd.f32 0.0, %v2045
        %v2047 = vpop.f32.mrb[0].mxu0
        %v2048 = vadd.f32 0.0, %v2047
        %v2049 = vpop.f32.mrb[0].mxu0
        %v2050 = vadd.f32 0.0, %v2049
        %2051 = vmatprep.mubr.bf16.mxu0 %v928
        %2052 = vmatmul.mubr.bf16.gmra.mrb[0].mxu0 %v927
        %v2053 = vpop.f32.mrb[0].mxu0
        %v2054 = vadd.f32 0.0, %v2053
        %v2055 = vpop.f32.mrb[0].mxu0
        %v2056 = vadd.f32 0.0, %v2055
        %v2057 = vpop.f32.mrb[0].mxu0
        %v2058 = vadd.f32 0.0, %v2057
        %v2059 = vpop.f32.mrb[0].mxu0
        %v2060 = vadd.f32 0.0, %v2059
        %2061 = vmatprep.mubr.bf16.mxu0 %v932
        %2062 = vmatmul.mubr.bf16.gmra.mrb[0].mxu0 %v931
        %v2063 = vpop.f32.mrb[0].mxu0
        %v2064 = vadd.f32 0.0, %v2063
        %v2065 = vpop.f32.mrb[0].mxu0
        %v2066 = vadd.f32 0.0, %v2065
        %v2067 = vpop.f32.mrb[0].mxu0
        %v2068 = vadd.f32 0.0, %v2067
        %v2069 = vpop.f32.mrb[0].mxu0
        %v2070 = vadd.f32 0.0, %v2069
        %2071 = vmatprep.mubr.bf16.mxu0 %v936
        %2072 = vmatmul.mubr.bf16.gmra.mrb[0].mxu0 %v935
        %v2073 = vpop.f32.mrb[0].mxu0
        %v2074 = vadd.f32 0.0, %v2073
        %v2075 = vpop.f32.mrb[0].mxu0
        %v2076 = vadd.f32 0.0, %v2075
        %v2077 = vpop.f32.mrb[0].mxu0
        %v2078 = vadd.f32 0.0, %v2077
        %v2079 = vpop.f32.mrb[0].mxu0
        %v2080 = vadd.f32 0.0, %v2079
        %2081 = vmatprep.mubr.bf16.mxu0 %v940
        %2082 = vmatmul.mubr.bf16.gmra.mrb[0].mxu0 %v939
        %v2083 = vpop.f32.mrb[0].mxu0
        %v2084 = vadd.f32 0.0, %v2083
        %v2085 = vpop.f32.mrb[0].mxu0
        %v2086 = vadd.f32 0.0, %v2085
        %v2087 = vpop.f32.mrb[0].mxu0
        %v2088 = vadd.f32 0.0, %v2087
        %v2089 = vpop.f32.mrb[0].mxu0
        %v2090 = vadd.f32 0.0, %v2089
        %2091 = vmatprep.mubr.bf16.mxu0 %v944
        %2092 = vmatmul.mubr.bf16.gmra.mrb[0].mxu0 %v943
        %v2093 = vpop.f32.mrb[0].mxu0
        %v2094 = vadd.f32 0.0, %v2093
        %v2095 = vpop.f32.mrb[0].mxu0
        %v2096 = vadd.f32 0.0, %v2095
        %v2097 = vpop.f32.mrb[0].mxu0
        %v2098 = vadd.f32 0.0, %v2097
        %v2099 = vpop.f32.mrb[0].mxu0
        %v2100 = vadd.f32 0.0, %v2099
        %2101 = vmatprep.mubr.bf16.mxu0 %v948
        %2102 = vmatmul.mubr.bf16.gmra.mrb[0].mxu0 %v947
        %v2103 = vpop.f32.mrb[0].mxu0
        %v2104 = vadd.f32 0.0, %v2103
        %v2105 = vpop.f32.mrb[0].mxu0
        %v2106 = vadd.f32 0.0, %v2105
        %v2107 = vpop.f32.mrb[0].mxu0
        %v2108 = vadd.f32 0.0, %v2107
        %v2109 = vpop.f32.mrb[0].mxu0
        %v2110 = vadd.f32 0.0, %v2109
        %2111 = vmatprep.mubr.bf16.mxu0 %v952
        %2112 = vmatmul.mubr.bf16.gmra.mrb[0].mxu0 %v951
        %v2113 = vpop.f32.mrb[0].mxu0
        %v2114 = vadd.f32 0.0, %v2113
        %v2115 = vpop.f32.mrb[0].mxu0
        %v2116 = vadd.f32 0.0, %v2115
        %v2117 = vpop.f32.mrb[0].mxu0
        %v2118 = vadd.f32 0.0, %v2117
        %v2119 = vpop.f32.mrb[0].mxu0
        %v2120 = vadd.f32 0.0, %v2119
        %2121 = vmatprep.mubr.bf16.mxu0 %v956
        %2122 = vmatmul.mubr.bf16.gmra.mrb[0].mxu0 %v955
        %v2123 = vpop.f32.mrb[0].mxu0
        %v2124 = vadd.f32 0.0, %v2123
        %v2125 = vpop.f32.mrb[0].mxu0
        %v2126 = vadd.f32 0.0, %v2125
        %v2127 = vpop.f32.mrb[0].mxu0
        %v2128 = vadd.f32 0.0, %v2127
        %v2129 = vpop.f32.mrb[0].mxu0
        %v2130 = vadd.f32 0.0, %v2129
        %2131 = vmatprep.mubr.bf16.mxu0 %v960
        %2132 = vmatmul.mubr.bf16.gmra.mrb[0].mxu0 %v959
        %v2133 = vpop.f32.mrb[0].mxu0
        %v2134 = vadd.f32 0.0, %v2133
        %v2135 = vpop.f32.mrb[0].mxu0
        %v2136 = vadd.f32 0.0, %v2135
        %v2137 = vpop.f32.mrb[0].mxu0
        %v2138 = vadd.f32 0.0, %v2137
        %v2139 = vpop.f32.mrb[0].mxu0
        %v2140 = vadd.f32 0.0, %v2139
        %2141 = vmatprep.mubr.bf16.mxu0 %v964
        %2142 = vmatmul.mubr.bf16.gmra.mrb[0].mxu0 %v963
        %v2143 = vpop.f32.mrb[0].mxu0
        %v2144 = vadd.f32 0.0, %v2143
        %v2145 = vpop.f32.mrb[0].mxu0
        %v2146 = vadd.f32 0.0, %v2145
        %v2147 = vpop.f32.mrb[0].mxu0
        %v2148 = vadd.f32 0.0, %v2147
        %v2149 = vpop.f32.mrb[0].mxu0
        %v2150 = vadd.f32 0.0, %v2149
        %2151 = vmatprep.mubr.bf16.mxu0 %v968
        %2152 = vmatmul.mubr.bf16.gmra.mrb[0].mxu0 %v967
        %v2153 = vpop.f32.mrb[0].mxu0
        %v2154 = vadd.f32 0.0, %v2153
        %v2155 = vpop.f32.mrb[0].mxu0
        %v2156 = vadd.f32 0.0, %v2155
        %v2157 = vpop.f32.mrb[0].mxu0
        %v2158 = vadd.f32 0.0, %v2157
        %v2159 = vpop.f32.mrb[0].mxu0
        %v2160 = vadd.f32 0.0, %v2159
        %2161 = vmatprep.mubr.bf16.mxu0 %v972
        %2162 = vmatmul.mubr.bf16.gmra.mrb[0].mxu0 %v971
        %v2163 = vpop.f32.mrb[0].mxu0
        %v2164 = vadd.f32 0.0, %v2163
        %v2165 = vpop.f32.mrb[0].mxu0
        %v2166 = vadd.f32 0.0, %v2165
        %v2167 = vpop.f32.mrb[0].mxu0
        %v2168 = vadd.f32 0.0, %v2167
        %v2169 = vpop.f32.mrb[0].mxu0
        %v2170 = vadd.f32 0.0, %v2169
        %2171 = vmatprep.mubr.bf16.mxu0 %v976
        %2172 = vmatmul.mubr.bf16.gmra.mrb[0].mxu0 %v975
        %v2173 = vpop.f32.mrb[0].mxu0
        %v2174 = vadd.f32 0.0, %v2173
        %v2175 = vpop.f32.mrb[0].mxu0
        %v2176 = vadd.f32 0.0, %v2175
        %v2177 = vpop.f32.mrb[0].mxu0
        %v2178 = vadd.f32 0.0, %v2177
        %v2179 = vpop.f32.mrb[0].mxu0
        %v2180 = vadd.f32 0.0, %v2179
        %2181 = vmatprep.mubr.bf16.mxu0 %v980
        %2182 = vmatmul.mubr.bf16.gmra.mrb[0].mxu0 %v979
        %v2183 = vpop.f32.mrb[0].mxu0
        %v2184 = vadd.f32 0.0, %v2183
        %v2185 = vpop.f32.mrb[0].mxu0
        %v2186 = vadd.f32 0.0, %v2185
        %v2187 = vpop.f32.mrb[0].mxu0
        %v2188 = vadd.f32 0.0, %v2187
        %v2189 = vpop.f32.mrb[0].mxu0
        %v2190 = vadd.f32 0.0, %v2189
        %2191 = vmatprep.mubr.bf16.mxu0 %v984
        %2192 = vmatmul.mubr.bf16.gmra.mrb[0].mxu0 %v983
        %v2193 = vpop.f32.mrb[0].mxu0
        %v2194 = vadd.f32 0.0, %v2193
        %v2195 = vpop.f32.mrb[0].mxu0
        %v2196 = vadd.f32 0.0, %v2195
        %v2197 = vpop.f32.mrb[0].mxu0
        %v2198 = vadd.f32 0.0, %v2197
        %v2199 = vpop.f32.mrb[0].mxu0
        %v2200 = vadd.f32 0.0, %v2199
        %2201 = vmatprep.mubr.bf16.mxu0 %v988
        %2202 = vmatmul.mubr.bf16.gmra.mrb[0].mxu0 %v987
        %v2203 = vpop.f32.mrb[0].mxu0
        %v2204 = vadd.f32 0.0, %v2203
        %v2205 = vpop.f32.mrb[0].mxu0
        %v2206 = vadd.f32 0.0, %v2205
        %v2207 = vpop.f32.mrb[0].mxu0
        %v2208 = vadd.f32 0.0, %v2207
        %v2209 = vpop.f32.mrb[0].mxu0
        %v2210 = vadd.f32 0.0, %v2209
        %2211 = vmatprep.mubr.bf16.mxu0 %v992
        %2212 = vmatmul.mubr.bf16.gmra.mrb[0].mxu0 %v991
        %v2213 = vpop.f32.mrb[0].mxu0
        %v2214 = vadd.f32 0.0, %v2213
        %v2215 = vpop.f32.mrb[0].mxu0
        %v2216 = vadd.f32 0.0, %v2215
        %v2217 = vpop.f32.mrb[0].mxu0
        %v2218 = vadd.f32 0.0, %v2217
        %v2219 = vpop.f32.mrb[0].mxu0
        %v2220 = vadd.f32 0.0, %v2219
        %2221 = vmatprep.mubr.bf16.mxu0 %v996
        %2222 = vmatmul.mubr.bf16.gmra.mrb[0].mxu0 %v995
        %v2223 = vpop.f32.mrb[0].mxu0
        %v2224 = vadd.f32 0.0, %v2223
        %v2225 = vpop.f32.mrb[0].mxu0
        %v2226 = vadd.f32 0.0, %v2225
        %v2227 = vpop.f32.mrb[0].mxu0
        %v2228 = vadd.f32 0.0, %v2227
        %v2229 = vpop.f32.mrb[0].mxu0
        %v2230 = vadd.f32 0.0, %v2229
        %2231 = vmatprep.mubr.bf16.mxu0 %v1000
        %2232 = vmatmul.mubr.bf16.gmra.mrb[0].mxu0 %v999
        %v2233 = vpop.f32.mrb[0].mxu0
        %v2234 = vadd.f32 0.0, %v2233
        %v2235 = vpop.f32.mrb[0].mxu0
        %v2236 = vadd.f32 0.0, %v2235
        %v2237 = vpop.f32.mrb[0].mxu0
        %v2238 = vadd.f32 0.0, %v2237
        %v2239 = vpop.f32.mrb[0].mxu0
        %v2240 = vadd.f32 0.0, %v2239
        %2241 = vmatprep.mubr.bf16.mxu0 %v1004
        %2242 = vmatmul.mubr.bf16.gmra.mrb[0].mxu0 %v1003
        %v2243 = vpop.f32.mrb[0].mxu0
        %v2244 = vadd.f32 0.0, %v2243
        %v2245 = vpop.f32.mrb[0].mxu0
        %v2246 = vadd.f32 0.0, %v2245
        %v2247 = vpop.f32.mrb[0].mxu0
        %v2248 = vadd.f32 0.0, %v2247
        %v2249 = vpop.f32.mrb[0].mxu0
        %v2250 = vadd.f32 0.0, %v2249
        %2251 = vmatprep.mubr.bf16.mxu0 %v1008
        %2252 = vmatmul.mubr.bf16.gmra.mrb[0].mxu0 %v1007
        %v2253 = vpop.f32.mrb[0].mxu0
        %v2254 = vadd.f32 0.0, %v2253
        %v2255 = vpop.f32.mrb[0].mxu0
        %v2256 = vadd.f32 0.0, %v2255
        %v2257 = vpop.f32.mrb[0].mxu0
        %v2258 = vadd.f32 0.0, %v2257
        %v2259 = vpop.f32.mrb[0].mxu0
        %v2260 = vadd.f32 0.0, %v2259
        %2261 = vdwg.mxu0
        %2262 = vmatprep.subr.bf16.mxu0 %v1878
        %2263 = vmatpush1.bf16.msra.mxu0 %v1877
        %2264 = vmatprep.subr.bf16.mxu0 %v1880
        %2265 = vmatpush1.bf16.msra.mxu0 %v1879
        %2266 = vmatprep.subr.bf16.mxu0 %v1882
        %2267 = vmatpush1.bf16.msra.mxu0 %v1881
        %2268 = vmatprep.subr.bf16.mxu0 %v1884
        %2269 = vmatpush1.bf16.msra.mxu0 %v1883
        %2270 = vmatprep.subr.bf16.mxu0 %v1886
        %2271 = vmatpush1.bf16.msra.mxu0 %v1885
        %2272 = vmatprep.subr.bf16.mxu0 %v1888
        %2273 = vmatpush1.bf16.msra.mxu0 %v1887
        %2274 = vmatprep.subr.bf16.mxu0 %v1890
        %2275 = vmatpush1.bf16.msra.mxu0 %v1889
        %2276 = vmatprep.subr.bf16.mxu0 %v1892
        %2277 = vmatpush1.bf16.msra.mxu0 %v1891
        %2278 = vmatprep.subr.bf16.mxu0 %v1894
        %2279 = vmatpush1.bf16.msra.mxu0 %v1893
        %2280 = vmatprep.subr.bf16.mxu0 %v1896
        %2281 = vmatpush1.bf16.msra.mxu0 %v1895
        %2282 = vmatprep.subr.bf16.mxu0 %v1898
        %2283 = vmatpush1.bf16.msra.mxu0 %v1897
        %2284 = vmatprep.subr.bf16.mxu0 %v1900
        %2285 = vmatpush1.bf16.msra.mxu0 %v1899
        %2286 = vmatprep.subr.bf16.mxu0 %v1902
        %2287 = vmatpush1.bf16.msra.mxu0 %v1901
        %2288 = vmatprep.subr.bf16.mxu0 %v1904
        %2289 = vmatpush1.bf16.msra.mxu0 %v1903
        %2290 = vmatprep.subr.bf16.mxu0 %v1906
        %2291 = vmatpush1.bf16.msra.mxu0 %v1905
        %2292 = vmatprep.subr.bf16.mxu0 %v1908
        %2293 = vmatpush1.bf16.msra.mxu0 %v1907
        %2294 = vmatprep.mubr.bf16.mxu0 %v886
        %2295 = vmatmul.mubr.bf16.gmra.mrb[0].mxu0 %v885
        %v2296 = vpop.f32.mrb[0].mxu0
        %v2297 = vadd.f32 %v1944, %v2296
        %v2298 = vpop.f32.mrb[0].mxu0
        %v2299 = vadd.f32 %v1946, %v2298
        %v2300 = vpop.f32.mrb[0].mxu0
        %v2301 = vadd.f32 %v1948, %v2300
        %v2302 = vpop.f32.mrb[0].mxu0
        %v2303 = vadd.f32 %v1950, %v2302
        %2304 = vmatprep.mubr.bf16.mxu0 %v890
        %2305 = vmatmul.mubr.bf16.gmra.mrb[0].mxu0 %v889
        %v2306 = vpop.f32.mrb[0].mxu0
        %v2307 = vadd.f32 %v1954, %v2306
        %v2308 = vpop.f32.mrb[0].mxu0
        %v2309 = vadd.f32 %v1956, %v2308
        %v2310 = vpop.f32.mrb[0].mxu0
        %v2311 = vadd.f32 %v1958, %v2310
        %v2312 = vpop.f32.mrb[0].mxu0
        %v2313 = vadd.f32 %v1960, %v2312
        %2314 = vmatprep.mubr.bf16.mxu0 %v894
        %2315 = vmatmul.mubr.bf16.gmra.mrb[0].mxu0 %v893
        %v2316 = vpop.f32.mrb[0].mxu0
        %v2317 = vadd.f32 %v1964, %v2316
        %v2318 = vpop.f32.mrb[0].mxu0
        %v2319 = vadd.f32 %v1966, %v2318
        %v2320 = vpop.f32.mrb[0].mxu0
        %v2321 = vadd.f32 %v1968, %v2320
        %v2322 = vpop.f32.mrb[0].mxu0
        %v2323 = vadd.f32 %v1970, %v2322
        %2324 = vmatprep.mubr.bf16.mxu0 %v898
        %2325 = vmatmul.mubr.bf16.gmra.mrb[0].mxu0 %v897
        %v2326 = vpop.f32.mrb[0].mxu0
        %v2327 = vadd.f32 %v1974, %v2326
        %v2328 = vpop.f32.mrb[0].mxu0
        %v2329 = vadd.f32 %v1976, %v2328
        %v2330 = vpop.f32.mrb[0].mxu0
        %v2331 = vadd.f32 %v1978, %v2330
        %v2332 = vpop.f32.mrb[0].mxu0
        %v2333 = vadd.f32 %v1980, %v2332
        %2334 = vmatprep.mubr.bf16.mxu0 %v902
        %2335 = vmatmul.mubr.bf16.gmra.mrb[0].mxu0 %v901
        %v2336 = vpop.f32.mrb[0].mxu0
        %v2337 = vadd.f32 %v1984, %v2336
        %v2338 = vpop.f32.mrb[0].mxu0
        %v2339 = vadd.f32 %v1986, %v2338
        %v2340 = vpop.f32.mrb[0].mxu0
        %v2341 = vadd.f32 %v1988, %v2340
        %v2342 = vpop.f32.mrb[0].mxu0
        %v2343 = vadd.f32 %v1990, %v2342
        %2344 = vmatprep.mubr.bf16.mxu0 %v906
        %2345 = vmatmul.mubr.bf16.gmra.mrb[0].mxu0 %v905
        %v2346 = vpop.f32.mrb[0].mxu0
        %v2347 = vadd.f32 %v1994, %v2346
        %v2348 = vpop.f32.mrb[0].mxu0
        %v2349 = vadd.f32 %v1996, %v2348
        %v2350 = vpop.f32.mrb[0].mxu0
        %v2351 = vadd.f32 %v1998, %v2350
        %v2352 = vpop.f32.mrb[0].mxu0
        %v2353 = vadd.f32 %v2000, %v2352
        %2354 = vmatprep.mubr.bf16.mxu0 %v910
        %2355 = vmatmul.mubr.bf16.gmra.mrb[0].mxu0 %v909
        %v2356 = vpop.f32.mrb[0].mxu0
        %v2357 = vadd.f32 %v2004, %v2356
        %v2358 = vpop.f32.mrb[0].mxu0
        %v2359 = vadd.f32 %v2006, %v2358
        %v2360 = vpop.f32.mrb[0].mxu0
        %v2361 = vadd.f32 %v2008, %v2360
        %v2362 = vpop.f32.mrb[0].mxu0
        %v2363 = vadd.f32 %v2010, %v2362
        %2364 = vmatprep.mubr.bf16.mxu0 %v914
        %2365 = vmatmul.mubr.bf16.gmra.mrb[0].mxu0 %v913
        %v2366 = vpop.f32.mrb[0].mxu0
        %v2367 = vadd.f32 %v2014, %v2366
        %v2368 = vpop.f32.mrb[0].mxu0
        %v2369 = vadd.f32 %v2016, %v2368
        %v2370 = vpop.f32.mrb[0].mxu0
        %v2371 = vadd.f32 %v2018, %v2370
        %v2372 = vpop.f32.mrb[0].mxu0
        %v2373 = vadd.f32 %v2020, %v2372
        %2374 = vmatprep.mubr.bf16.mxu0 %v918
        %2375 = vmatmul.mubr.bf16.gmra.mrb[0].mxu0 %v917
        %v2376 = vpop.f32.mrb[0].mxu0
        %v2377 = vadd.f32 %v2024, %v2376
        %v2378 = vpop.f32.mrb[0].mxu0
        %v2379 = vadd.f32 %v2026, %v2378
        %v2380 = vpop.f32.mrb[0].mxu0
        %v2381 = vadd.f32 %v2028, %v2380
        %v2382 = vpop.f32.mrb[0].mxu0
        %v2383 = vadd.f32 %v2030, %v2382
        %2384 = vmatprep.mubr.bf16.mxu0 %v922
        %2385 = vmatmul.mubr.bf16.gmra.mrb[0].mxu0 %v921
        %v2386 = vpop.f32.mrb[0].mxu0
        %v2387 = vadd.f32 %v2034, %v2386
        %v2388 = vpop.f32.mrb[0].mxu0
        %v2389 = vadd.f32 %v2036, %v2388
        %v2390 = vpop.f32.mrb[0].mxu0
        %v2391 = vadd.f32 %v2038, %v2390
        %v2392 = vpop.f32.mrb[0].mxu0
        %v2393 = vadd.f32 %v2040, %v2392
        %2394 = vmatprep.mubr.bf16.mxu0 %v926
        %2395 = vmatmul.mubr.bf16.gmra.mrb[0].mxu0 %v925
        %v2396 = vpop.f32.mrb[0].mxu0
        %v2397 = vadd.f32 %v2044, %v2396
        %v2398 = vpop.f32.mrb[0].mxu0
        %v2399 = vadd.f32 %v2046, %v2398
        %v2400 = vpop.f32.mrb[0].mxu0
        %v2401 = vadd.f32 %v2048, %v2400
        %v2402 = vpop.f32.mrb[0].mxu0
        %v2403 = vadd.f32 %v2050, %v2402
        %2404 = vmatprep.mubr.bf16.mxu0 %v930
        %2405 = vmatmul.mubr.bf16.gmra.mrb[0].mxu0 %v929
        %v2406 = vpop.f32.mrb[0].mxu0
        %v2407 = vadd.f32 %v2054, %v2406
        %v2408 = vpop.f32.mrb[0].mxu0
        %v2409 = vadd.f32 %v2056, %v2408
        %v2410 = vpop.f32.mrb[0].mxu0
        %v2411 = vadd.f32 %v2058, %v2410
        %v2412 = vpop.f32.mrb[0].mxu0
        %v2413 = vadd.f32 %v2060, %v2412
        %2414 = vmatprep.mubr.bf16.mxu0 %v934
        %2415 = vmatmul.mubr.bf16.gmra.mrb[0].mxu0 %v933
        %v2416 = vpop.f32.mrb[0].mxu0
        %v2417 = vadd.f32 %v2064, %v2416
        %v2418 = vpop.f32.mrb[0].mxu0
        %v2419 = vadd.f32 %v2066, %v2418
        %v2420 = vpop.f32.mrb[0].mxu0
        %v2421 = vadd.f32 %v2068, %v2420
        %v2422 = vpop.f32.mrb[0].mxu0
        %v2423 = vadd.f32 %v2070, %v2422
        %2424 = vmatprep.mubr.bf16.mxu0 %v938
        %2425 = vmatmul.mubr.bf16.gmra.mrb[0].mxu0 %v937
        %v2426 = vpop.f32.mrb[0].mxu0
        %v2427 = vadd.f32 %v2074, %v2426
        %v2428 = vpop.f32.mrb[0].mxu0
        %v2429 = vadd.f32 %v2076, %v2428
        %v2430 = vpop.f32.mrb[0].mxu0
        %v2431 = vadd.f32 %v2078, %v2430
        %v2432 = vpop.f32.mrb[0].mxu0
        %v2433 = vadd.f32 %v2080, %v2432
        %2434 = vmatprep.mubr.bf16.mxu0 %v942
        %2435 = vmatmul.mubr.bf16.gmra.mrb[0].mxu0 %v941
        %v2436 = vpop.f32.mrb[0].mxu0
        %v2437 = vadd.f32 %v2084, %v2436
        %v2438 = vpop.f32.mrb[0].mxu0
        %v2439 = vadd.f32 %v2086, %v2438
        %v2440 = vpop.f32.mrb[0].mxu0
        %v2441 = vadd.f32 %v2088, %v2440
        %v2442 = vpop.f32.mrb[0].mxu0
        %v2443 = vadd.f32 %v2090, %v2442
        %2444 = vmatprep.mubr.bf16.mxu0 %v946
        %2445 = vmatmul.mubr.bf16.gmra.mrb[0].mxu0 %v945
        %v2446 = vpop.f32.mrb[0].mxu0
        %v2447 = vadd.f32 %v2094, %v2446
        %v2448 = vpop.f32.mrb[0].mxu0
        %v2449 = vadd.f32 %v2096, %v2448
        %v2450 = vpop.f32.mrb[0].mxu0
        %v2451 = vadd.f32 %v2098, %v2450
        %v2452 = vpop.f32.mrb[0].mxu0
        %v2453 = vadd.f32 %v2100, %v2452
        %2454 = vmatprep.mubr.bf16.mxu0 %v950
        %2455 = vmatmul.mubr.bf16.gmra.mrb[0].mxu0 %v949
        %v2456 = vpop.f32.mrb[0].mxu0
        %v2457 = vadd.f32 %v2104, %v2456
        %v2458 = vpop.f32.mrb[0].mxu0
        %v2459 = vadd.f32 %v2106, %v2458
        %v2460 = vpop.f32.mrb[0].mxu0
        %v2461 = vadd.f32 %v2108, %v2460
        %v2462 = vpop.f32.mrb[0].mxu0
        %v2463 = vadd.f32 %v2110, %v2462
        %2464 = vmatprep.mubr.bf16.mxu0 %v954
        %2465 = vmatmul.mubr.bf16.gmra.mrb[0].mxu0 %v953
        %v2466 = vpop.f32.mrb[0].mxu0
        %v2467 = vadd.f32 %v2114, %v2466
        %v2468 = vpop.f32.mrb[0].mxu0
        %v2469 = vadd.f32 %v2116, %v2468
        %v2470 = vpop.f32.mrb[0].mxu0
        %v2471 = vadd.f32 %v2118, %v2470
        %v2472 = vpop.f32.mrb[0].mxu0
        %v2473 = vadd.f32 %v2120, %v2472
        %2474 = vmatprep.mubr.bf16.mxu0 %v958
        %2475 = vmatmul.mubr.bf16.gmra.mrb[0].mxu0 %v957
        %v2476 = vpop.f32.mrb[0].mxu0
        %v2477 = vadd.f32 %v2124, %v2476
        %v2478 = vpop.f32.mrb[0].mxu0
        %v2479 = vadd.f32 %v2126, %v2478
        %v2480 = vpop.f32.mrb[0].mxu0
        %v2481 = vadd.f32 %v2128, %v2480
        %v2482 = vpop.f32.mrb[0].mxu0
        %v2483 = vadd.f32 %v2130, %v2482
        %2484 = vmatprep.mubr.bf16.mxu0 %v962
        %2485 = vmatmul.mubr.bf16.gmra.mrb[0].mxu0 %v961
        %v2486 = vpop.f32.mrb[0].mxu0
        %v2487 = vadd.f32 %v2134, %v2486
        %v2488 = vpop.f32.mrb[0].mxu0
        %v2489 = vadd.f32 %v2136, %v2488
        %v2490 = vpop.f32.mrb[0].mxu0
        %v2491 = vadd.f32 %v2138, %v2490
        %v2492 = vpop.f32.mrb[0].mxu0
        %v2493 = vadd.f32 %v2140, %v2492
        %2494 = vmatprep.mubr.bf16.mxu0 %v966
        %2495 = vmatmul.mubr.bf16.gmra.mrb[0].mxu0 %v965
        %v2496 = vpop.f32.mrb[0].mxu0
        %v2497 = vadd.f32 %v2144, %v2496
        %v2498 = vpop.f32.mrb[0].mxu0
        %v2499 = vadd.f32 %v2146, %v2498
        %v2500 = vpop.f32.mrb[0].mxu0
        %v2501 = vadd.f32 %v2148, %v2500
        %v2502 = vpop.f32.mrb[0].mxu0
        %v2503 = vadd.f32 %v2150, %v2502
        %2504 = vmatprep.mubr.bf16.mxu0 %v970
        %2505 = vmatmul.mubr.bf16.gmra.mrb[0].mxu0 %v969
        %v2506 = vpop.f32.mrb[0].mxu0
        %v2507 = vadd.f32 %v2154, %v2506
        %v2508 = vpop.f32.mrb[0].mxu0
        %v2509 = vadd.f32 %v2156, %v2508
        %v2510 = vpop.f32.mrb[0].mxu0
        %v2511 = vadd.f32 %v2158, %v2510
        %v2512 = vpop.f32.mrb[0].mxu0
        %v2513 = vadd.f32 %v2160, %v2512
        %2514 = vmatprep.mubr.bf16.mxu0 %v974
        %2515 = vmatmul.mubr.bf16.gmra.mrb[0].mxu0 %v973
        %v2516 = vpop.f32.mrb[0].mxu0
        %v2517 = vadd.f32 %v2164, %v2516
        %v2518 = vpop.f32.mrb[0].mxu0
        %v2519 = vadd.f32 %v2166, %v2518
        %v2520 = vpop.f32.mrb[0].mxu0
        %v2521 = vadd.f32 %v2168, %v2520
        %v2522 = vpop.f32.mrb[0].mxu0
        %v2523 = vadd.f32 %v2170, %v2522
        %2524 = vmatprep.mubr.bf16.mxu0 %v978
        %2525 = vmatmul.mubr.bf16.gmra.mrb[0].mxu0 %v977
        %v2526 = vpop.f32.mrb[0].mxu0
        %v2527 = vadd.f32 %v2174, %v2526
        %v2528 = vpop.f32.mrb[0].mxu0
        %v2529 = vadd.f32 %v2176, %v2528
        %v2530 = vpop.f32.mrb[0].mxu0
        %v2531 = vadd.f32 %v2178, %v2530
        %v2532 = vpop.f32.mrb[0].mxu0
        %v2533 = vadd.f32 %v2180, %v2532
        %2534 = vmatprep.mubr.bf16.mxu0 %v982
        %2535 = vmatmul.mubr.bf16.gmra.mrb[0].mxu0 %v981
        %v2536 = vpop.f32.mrb[0].mxu0
        %v2537 = vadd.f32 %v2184, %v2536
        %v2538 = vpop.f32.mrb[0].mxu0
        %v2539 = vadd.f32 %v2186, %v2538
        %v2540 = vpop.f32.mrb[0].mxu0
        %v2541 = vadd.f32 %v2188, %v2540
        %v2542 = vpop.f32.mrb[0].mxu0
        %v2543 = vadd.f32 %v2190, %v2542
        %2544 = vmatprep.mubr.bf16.mxu0 %v986
        %2545 = vmatmul.mubr.bf16.gmra.mrb[0].mxu0 %v985
        %v2546 = vpop.f32.mrb[0].mxu0
        %v2547 = vadd.f32 %v2194, %v2546
        %v2548 = vpop.f32.mrb[0].mxu0
        %v2549 = vadd.f32 %v2196, %v2548
        %v2550 = vpop.f32.mrb[0].mxu0
        %v2551 = vadd.f32 %v2198, %v2550
        %v2552 = vpop.f32.mrb[0].mxu0
        %v2553 = vadd.f32 %v2200, %v2552
        %2554 = vmatprep.mubr.bf16.mxu0 %v990
        %2555 = vmatmul.mubr.bf16.gmra.mrb[0].mxu0 %v989
        %v2556 = vpop.f32.mrb[0].mxu0
        %v2557 = vadd.f32 %v2204, %v2556
        %v2558 = vpop.f32.mrb[0].mxu0
        %v2559 = vadd.f32 %v2206, %v2558
        %v2560 = vpop.f32.mrb[0].mxu0
        %v2561 = vadd.f32 %v2208, %v2560
        %v2562 = vpop.f32.mrb[0].mxu0
        %v2563 = vadd.f32 %v2210, %v2562
        %2564 = vmatprep.mubr.bf16.mxu0 %v994
        %2565 = vmatmul.mubr.bf16.gmra.mrb[0].mxu0 %v993
        %v2566 = vpop.f32.mrb[0].mxu0
        %v2567 = vadd.f32 %v2214, %v2566
        %v2568 = vpop.f32.mrb[0].mxu0
        %v2569 = vadd.f32 %v2216, %v2568
        %v2570 = vpop.f32.mrb[0].mxu0
        %v2571 = vadd.f32 %v2218, %v2570
        %v2572 = vpop.f32.mrb[0].mxu0
        %v2573 = vadd.f32 %v2220, %v2572
        %2574 = vmatprep.mubr.bf16.mxu0 %v998
        %2575 = vmatmul.mubr.bf16.gmra.mrb[0].mxu0 %v997
        %v2576 = vpop.f32.mrb[0].mxu0
        %v2577 = vadd.f32 %v2224, %v2576
        %v2578 = vpop.f32.mrb[0].mxu0
        %v2579 = vadd.f32 %v2226, %v2578
        %v2580 = vpop.f32.mrb[0].mxu0
        %v2581 = vadd.f32 %v2228, %v2580
        %v2582 = vpop.f32.mrb[0].mxu0
        %v2583 = vadd.f32 %v2230, %v2582
        %2584 = vmatprep.mubr.bf16.mxu0 %v1002
        %2585 = vmatmul.mubr.bf16.gmra.mrb[0].mxu0 %v1001
        %v2586 = vpop.f32.mrb[0].mxu0
        %v2587 = vadd.f32 %v2234, %v2586
        %v2588 = vpop.f32.mrb[0].mxu0
        %v2589 = vadd.f32 %v2236, %v2588
        %v2590 = vpop.f32.mrb[0].mxu0
        %v2591 = vadd.f32 %v2238, %v2590
        %v2592 = vpop.f32.mrb[0].mxu0
        %v2593 = vadd.f32 %v2240, %v2592
        %2594 = vmatprep.mubr.bf16.mxu0 %v1006
        %2595 = vmatmul.mubr.bf16.gmra.mrb[0].mxu0 %v1005
        %v2596 = vpop.f32.mrb[0].mxu0
        %v2597 = vadd.f32 %v2244, %v2596
        %v2598 = vpop.f32.mrb[0].mxu0
        %v2599 = vadd.f32 %v2246, %v2598
        %v2600 = vpop.f32.mrb[0].mxu0
        %v2601 = vadd.f32 %v2248, %v2600
        %v2602 = vpop.f32.mrb[0].mxu0
        %v2603 = vadd.f32 %v2250, %v2602
        %2604 = vmatprep.mubr.bf16.mxu0 %v1010
        %2605 = vmatmul.mubr.bf16.gmra.mrb[0].mxu0 %v1009
        %v2606 = vpop.f32.mrb[0].mxu0
        %v2607 = vadd.f32 %v2254, %v2606
        %v2608 = vpop.f32.mrb[0].mxu0
        %v2609 = vadd.f32 %v2256, %v2608
        %v2610 = vpop.f32.mrb[0].mxu0
        %v2611 = vadd.f32 %v2258, %v2610
        %v2612 = vpop.f32.mrb[0].mxu0
        %v2613 = vadd.f32 %v2260, %v2612
        %2614 = vdwg.mxu0
        %v2615 = vadd.f32 %v307, %v2297
        %v2616 = vadd.f32 %v308, %v2299
        %v2617 = vadd.f32 %v309, %v2301
        %v2618 = vadd.f32 %v310, %v2303
        %v2619 = vadd.f32 %v311, %v2307
        %v2620 = vadd.f32 %v312, %v2309
        %v2621 = vadd.f32 %v313, %v2311
        %v2622 = vadd.f32 %v314, %v2313
        %v2623 = vadd.f32 %v315, %v2317
        %v2624 = vadd.f32 %v316, %v2319
        %v2625 = vadd.f32 %v317, %v2321
        %v2626 = vadd.f32 %v318, %v2323
        %v2627 = vadd.f32 %v319, %v2327
        %v2628 = vadd.f32 %v320, %v2329
        %v2629 = vadd.f32 %v321, %v2331
        %v2630 = vadd.f32 %v322, %v2333
        %v2631 = vadd.f32 %v323, %v2337
        %v2632 = vadd.f32 %v324, %v2339
        %v2633 = vadd.f32 %v325, %v2341
        %v2634 = vadd.f32 %v326, %v2343
        %v2635 = vadd.f32 %v327, %v2347
        %v2636 = vadd.f32 %v328, %v2349
        %v2637 = vadd.f32 %v329, %v2351
        %v2638 = vadd.f32 %v330, %v2353
        %v2639 = vadd.f32 %v331, %v2357
        %v2640 = vadd.f32 %v332, %v2359
        %v2641 = vadd.f32 %v333, %v2361
        %v2642 = vadd.f32 %v334, %v2363
        %v2643 = vadd.f32 %v335, %v2367
        %v2644 = vadd.f32 %v336, %v2369
        %v2645 = vadd.f32 %v337, %v2371
        %v2646 = vadd.f32 %v338, %v2373
        %v2647 = vadd.f32 %v339, %v2377
        %v2648 = vadd.f32 %v340, %v2379
        %v2649 = vadd.f32 %v341, %v2381
        %v2650 = vadd.f32 %v342, %v2383
        %v2651 = vadd.f32 %v343, %v2387
        %v2652 = vadd.f32 %v344, %v2389
        %v2653 = vadd.f32 %v345, %v2391
        %v2654 = vadd.f32 %v346, %v2393
        %v2655 = vadd.f32 %v347, %v2397
        %v2656 = vadd.f32 %v348, %v2399
        %v2657 = vadd.f32 %v349, %v2401
        %v2658 = vadd.f32 %v350, %v2403
        %v2659 = vadd.f32 %v351, %v2407
        %v2660 = vadd.f32 %v352, %v2409
        %v2661 = vadd.f32 %v353, %v2411
        %v2662 = vadd.f32 %v354, %v2413
        %v2663 = vadd.f32 %v355, %v2417
        %v2664 = vadd.f32 %v356, %v2419
        %v2665 = vadd.f32 %v357, %v2421
        %v2666 = vadd.f32 %v358, %v2423
        %v2667 = vadd.f32 %v359, %v2427
        %v2668 = vadd.f32 %v360, %v2429
        %v2669 = vadd.f32 %v361, %v2431
        %v2670 = vadd.f32 %v362, %v2433
        %v2671 = vadd.f32 %v363, %v2437
        %v2672 = vadd.f32 %v364, %v2439
        %v2673 = vadd.f32 %v365, %v2441
        %v2674 = vadd.f32 %v366, %v2443
        %v2675 = vadd.f32 %v367, %v2447
        %v2676 = vadd.f32 %v368, %v2449
        %v2677 = vadd.f32 %v369, %v2451
        %v2678 = vadd.f32 %v370, %v2453
        %v2679 = vadd.f32 %v371, %v2457
        %v2680 = vadd.f32 %v372, %v2459
        %v2681 = vadd.f32 %v373, %v2461
        %v2682 = vadd.f32 %v374, %v2463
        %v2683 = vadd.f32 %v375, %v2467
        %v2684 = vadd.f32 %v376, %v2469
        %v2685 = vadd.f32 %v377, %v2471
        %v2686 = vadd.f32 %v378, %v2473
        %v2687 = vadd.f32 %v379, %v2477
        %v2688 = vadd.f32 %v380, %v2479
        %v2689 = vadd.f32 %v381, %v2481
        %v2690 = vadd.f32 %v382, %v2483
        %v2691 = vadd.f32 %v383, %v2487
        %v2692 = vadd.f32 %v384, %v2489
        %v2693 = vadd.f32 %v385, %v2491
        %v2694 = vadd.f32 %v386, %v2493
        %v2695 = vadd.f32 %v387, %v2497
        %v2696 = vadd.f32 %v388, %v2499
        %v2697 = vadd.f32 %v389, %v2501
        %v2698 = vadd.f32 %v390, %v2503
        %v2699 = vadd.f32 %v391, %v2507
        %v2700 = vadd.f32 %v392, %v2509
        %v2701 = vadd.f32 %v393, %v2511
        %v2702 = vadd.f32 %v394, %v2513
        %v2703 = vadd.f32 %v395, %v2517
        %v2704 = vadd.f32 %v396, %v2519
        %v2705 = vadd.f32 %v397, %v2521
        %v2706 = vadd.f32 %v398, %v2523
        %v2707 = vadd.f32 %v399, %v2527
        %v2708 = vadd.f32 %v400, %v2529
        %v2709 = vadd.f32 %v401, %v2531
        %v2710 = vadd.f32 %v402, %v2533
        %v2711 = vadd.f32 %v403, %v2537
        %v2712 = vadd.f32 %v404, %v2539
        %v2713 = vadd.f32 %v405, %v2541
        %v2714 = vadd.f32 %v406, %v2543
        %v2715 = vadd.f32 %v407, %v2547
        %v2716 = vadd.f32 %v408, %v2549
        %v2717 = vadd.f32 %v409, %v2551
        %v2718 = vadd.f32 %v410, %v2553
        %v2719 = vadd.f32 %v411, %v2557
        %v2720 = vadd.f32 %v412, %v2559
        %v2721 = vadd.f32 %v413, %v2561
        %v2722 = vadd.f32 %v414, %v2563
        %v2723 = vadd.f32 %v415, %v2567
        %v2724 = vadd.f32 %v416, %v2569
        %v2725 = vadd.f32 %v417, %v2571
        %v2726 = vadd.f32 %v418, %v2573
        %v2727 = vadd.f32 %v419, %v2577
        %v2728 = vadd.f32 %v420, %v2579
        %v2729 = vadd.f32 %v421, %v2581
        %v2730 = vadd.f32 %v422, %v2583
        %v2731 = vadd.f32 %v423, %v2587
        %v2732 = vadd.f32 %v424, %v2589
        %v2733 = vadd.f32 %v425, %v2591
        %v2734 = vadd.f32 %v426, %v2593
        %v2735 = vadd.f32 %v427, %v2597
        %v2736 = vadd.f32 %v428, %v2599
        %v2737 = vadd.f32 %v429, %v2601
        %v2738 = vadd.f32 %v430, %v2603
        %v2739 = vadd.f32 %v431, %v2607
        %v2740 = vadd.f32 %v432, %v2609
        %v2741 = vadd.f32 %v433, %v2611
        %v2742 = vadd.f32 %v434, %v2613
        %2743 = vst [vmem:[%s176] sm:$0xff] %v2615
        %2744 = vst [vmem:[%s176 + $0x8] sm:$0xff] %v2616
        %2745 = vst [vmem:[%s176 + $0x10] sm:$0xff] %v2617
        %2746 = vst [vmem:[%s176 + $0x18] sm:$0xff] %v2618
        %2747 = vst [vmem:[%s176 + $0x20] sm:$0xff] %v2619
        %2748 = vst [vmem:[%s176 + $0x28] sm:$0xff] %v2620
        %2749 = vst [vmem:[%s176 + $0x30] sm:$0xff] %v2621
        %2750 = vst [vmem:[%s176 + $0x38] sm:$0xff] %v2622
        %2751 = vst [vmem:[%s176 + $0x40] sm:$0xff] %v2623
        %2752 = vst [vmem:[%s176 + $0x48] sm:$0xff] %v2624
        %2753 = vst [vmem:[%s176 + $0x50] sm:$0xff] %v2625
        %2754 = vst [vmem:[%s176 + $0x58] sm:$0xff] %v2626
        %2755 = vst [vmem:[%s176 + $0x60] sm:$0xff] %v2627
        %2756 = vst [vmem:[%s176 + $0x68] sm:$0xff] %v2628
        %2757 = vst [vmem:[%s176 + $0x70] sm:$0xff] %v2629
        %2758 = vst [vmem:[%s176 + $0x78] sm:$0xff] %v2630
        %2759 = vst [vmem:[%s176 + $0x80] sm:$0xff] %v2631
        %2760 = vst [vmem:[%s176 + $0x88] sm:$0xff] %v2632
        %2761 = vst [vmem:[%s176 + $0x90] sm:$0xff] %v2633
        %2762 = vst [vmem:[%s176 + $0x98] sm:$0xff] %v2634
        %2763 = vst [vmem:[%s176 + $0xa0] sm:$0xff] %v2635
        %2764 = vst [vmem:[%s176 + $0xa8] sm:$0xff] %v2636
        %2765 = vst [vmem:[%s176 + $0xb0] sm:$0xff] %v2637
        %2766 = vst [vmem:[%s176 + $0xb8] sm:$0xff] %v2638
        %2767 = vst [vmem:[%s176 + $0xc0] sm:$0xff] %v2639
        %2768 = vst [vmem:[%s176 + $0xc8] sm:$0xff] %v2640
        %2769 = vst [vmem:[%s176 + $0xd0] sm:$0xff] %v2641
        %2770 = vst [vmem:[%s176 + $0xd8] sm:$0xff] %v2642
        %2771 = vst [vmem:[%s176 + $0xe0] sm:$0xff] %v2643
        %2772 = vst [vmem:[%s176 + $0xe8] sm:$0xff] %v2644
        %2773 = vst [vmem:[%s176 + $0xf0] sm:$0xff] %v2645
        %2774 = vst [vmem:[%s176 + $0xf8] sm:$0xff] %v2646
        %2775 = vst [vmem:[%s176 + $0x100] sm:$0xff] %v2647
        %2776 = vst [vmem:[%s176 + $0x108] sm:$0xff] %v2648
        %2777 = vst [vmem:[%s176 + $0x110] sm:$0xff] %v2649
        %2778 = vst [vmem:[%s176 + $0x118] sm:$0xff] %v2650
        %2779 = vst [vmem:[%s176 + $0x120] sm:$0xff] %v2651
        %2780 = vst [vmem:[%s176 + $0x128] sm:$0xff] %v2652
        %2781 = vst [vmem:[%s176 + $0x130] sm:$0xff] %v2653
        %2782 = vst [vmem:[%s176 + $0x138] sm:$0xff] %v2654
        %2783 = vst [vmem:[%s176 + $0x140] sm:$0xff] %v2655
        %2784 = vst [vmem:[%s176 + $0x148] sm:$0xff] %v2656
        %2785 = vst [vmem:[%s176 + $0x150] sm:$0xff] %v2657
        %2786 = vst [vmem:[%s176 + $0x158] sm:$0xff] %v2658
        %2787 = vst [vmem:[%s176 + $0x160] sm:$0xff] %v2659
        %2788 = vst [vmem:[%s176 + $0x168] sm:$0xff] %v2660
        %2789 = vst [vmem:[%s176 + $0x170] sm:$0xff] %v2661
        %2790 = vst [vmem:[%s176 + $0x178] sm:$0xff] %v2662
        %2791 = vst [vmem:[%s176 + $0x180] sm:$0xff] %v2663
        %2792 = vst [vmem:[%s176 + $0x188] sm:$0xff] %v2664
        %2793 = vst [vmem:[%s176 + $0x190] sm:$0xff] %v2665
        %2794 = vst [vmem:[%s176 + $0x198] sm:$0xff] %v2666
        %2795 = vst [vmem:[%s176 + $0x1a0] sm:$0xff] %v2667
        %2796 = vst [vmem:[%s176 + $0x1a8] sm:$0xff] %v2668
        %2797 = vst [vmem:[%s176 + $0x1b0] sm:$0xff] %v2669
        %2798 = vst [vmem:[%s176 + $0x1b8] sm:$0xff] %v2670
        %2799 = vst [vmem:[%s176 + $0x1c0] sm:$0xff] %v2671
        %2800 = vst [vmem:[%s176 + $0x1c8] sm:$0xff] %v2672
        %2801 = vst [vmem:[%s176 + $0x1d0] sm:$0xff] %v2673
        %2802 = vst [vmem:[%s176 + $0x1d8] sm:$0xff] %v2674
        %2803 = vst [vmem:[%s176 + $0x1e0] sm:$0xff] %v2675
        %2804 = vst [vmem:[%s176 + $0x1e8] sm:$0xff] %v2676
        %2805 = vst [vmem:[%s176 + $0x1f0] sm:$0xff] %v2677
        %2806 = vst [vmem:[%s176 + $0x1f8] sm:$0xff] %v2678
        %2807 = vst [vmem:[%s176 + $0x200] sm:$0xff] %v2679
        %2808 = vst [vmem:[%s176 + $0x208] sm:$0xff] %v2680
        %2809 = vst [vmem:[%s176 + $0x210] sm:$0xff] %v2681
        %2810 = vst [vmem:[%s176 + $0x218] sm:$0xff] %v2682
        %2811 = vst [vmem:[%s176 + $0x220] sm:$0xff] %v2683
        %2812 = vst [vmem:[%s176 + $0x228] sm:$0xff] %v2684
        %2813 = vst [vmem:[%s176 + $0x230] sm:$0xff] %v2685
        %2814 = vst [vmem:[%s176 + $0x238] sm:$0xff] %v2686
        %2815 = vst [vmem:[%s176 + $0x240] sm:$0xff] %v2687
        %2816 = vst [vmem:[%s176 + $0x248] sm:$0xff] %v2688
        %2817 = vst [vmem:[%s176 + $0x250] sm:$0xff] %v2689
        %2818 = vst [vmem:[%s176 + $0x258] sm:$0xff] %v2690
        %2819 = vst [vmem:[%s176 + $0x260] sm:$0xff] %v2691
        %2820 = vst [vmem:[%s176 + $0x268] sm:$0xff] %v2692
        %2821 = vst [vmem:[%s176 + $0x270] sm:$0xff] %v2693
        %2822 = vst [vmem:[%s176 + $0x278] sm:$0xff] %v2694
        %2823 = vst [vmem:[%s176 + $0x280] sm:$0xff] %v2695
        %2824 = vst [vmem:[%s176 + $0x288] sm:$0xff] %v2696
        %2825 = vst [vmem:[%s176 + $0x290] sm:$0xff] %v2697
        %2826 = vst [vmem:[%s176 + $0x298] sm:$0xff] %v2698
        %2827 = vst [vmem:[%s176 + $0x2a0] sm:$0xff] %v2699
        %2828 = vst [vmem:[%s176 + $0x2a8] sm:$0xff] %v2700
        %2829 = vst [vmem:[%s176 + $0x2b0] sm:$0xff] %v2701
        %2830 = vst [vmem:[%s176 + $0x2b8] sm:$0xff] %v2702
        %2831 = vst [vmem:[%s176 + $0x2c0] sm:$0xff] %v2703
        %2832 = vst [vmem:[%s176 + $0x2c8] sm:$0xff] %v2704
        %2833 = vst [vmem:[%s176 + $0x2d0] sm:$0xff] %v2705
        %2834 = vst [vmem:[%s176 + $0x2d8] sm:$0xff] %v2706
        %2835 = vst [vmem:[%s176 + $0x2e0] sm:$0xff] %v2707
        %2836 = vst [vmem:[%s176 + $0x2e8] sm:$0xff] %v2708
        %2837 = vst [vmem:[%s176 + $0x2f0] sm:$0xff] %v2709
        %2838 = vst [vmem:[%s176 + $0x2f8] sm:$0xff] %v2710
        %2839 = vst [vmem:[%s176 + $0x300] sm:$0xff] %v2711
        %2840 = vst [vmem:[%s176 + $0x308] sm:$0xff] %v2712
        %2841 = vst [vmem:[%s176 + $0x310] sm:$0xff] %v2713
        %2842 = vst [vmem:[%s176 + $0x318] sm:$0xff] %v2714
        %2843 = vst [vmem:[%s176 + $0x320] sm:$0xff] %v2715
        %2844 = vst [vmem:[%s176 + $0x328] sm:$0xff] %v2716
        %2845 = vst [vmem:[%s176 + $0x330] sm:$0xff] %v2717
        %2846 = vst [vmem:[%s176 + $0x338] sm:$0xff] %v2718
        %2847 = vst [vmem:[%s176 + $0x340] sm:$0xff] %v2719
        %2848 = vst [vmem:[%s176 + $0x348] sm:$0xff] %v2720
        %2849 = vst [vmem:[%s176 + $0x350] sm:$0xff] %v2721
        %2850 = vst [vmem:[%s176 + $0x358] sm:$0xff] %v2722
        %2851 = vst [vmem:[%s176 + $0x360] sm:$0xff] %v2723
        %2852 = vst [vmem:[%s176 + $0x368] sm:$0xff] %v2724
        %2853 = vst [vmem:[%s176 + $0x370] sm:$0xff] %v2725
        %2854 = vst [vmem:[%s176 + $0x378] sm:$0xff] %v2726
        %2855 = vst [vmem:[%s176 + $0x380] sm:$0xff] %v2727
        %2856 = vst [vmem:[%s176 + $0x388] sm:$0xff] %v2728
        %2857 = vst [vmem:[%s176 + $0x390] sm:$0xff] %v2729
        %2858 = vst [vmem:[%s176 + $0x398] sm:$0xff] %v2730
        %2859 = vst [vmem:[%s176 + $0x3a0] sm:$0xff] %v2731
        %2860 = vst [vmem:[%s176 + $0x3a8] sm:$0xff] %v2732
        %2861 = vst [vmem:[%s176 + $0x3b0] sm:$0xff] %v2733
        %2862 = vst [vmem:[%s176 + $0x3b8] sm:$0xff] %v2734
        %2863 = vst [vmem:[%s176 + $0x3c0] sm:$0xff] %v2735
        %2864 = vst [vmem:[%s176 + $0x3c8] sm:$0xff] %v2736
        %2865 = vst [vmem:[%s176 + $0x3d0] sm:$0xff] %v2737
        %2866 = vst [vmem:[%s176 + $0x3d8] sm:$0xff] %v2738
        %2867 = vst [vmem:[%s176 + $0x3e0] sm:$0xff] %v2739
        %2868 = vst [vmem:[%s176 + $0x3e8] sm:$0xff] %v2740
        %2869 = vst [vmem:[%s176 + $0x3f0] sm:$0xff] %v2741
        %2870 = vst [vmem:[%s176 + $0x3f8] sm:$0xff] %v2742
        %s2871 = sand.u32 %s75, 1
        %s2872 = scalar_lea.sflag [#allocation4], %s2871
        %s2873 = sand.u32 %s75, 1
        %s2874 = smul.addr %s2873, 1024
        %s2875 = scalar_lea.vmem [#allocation7], %s2874
        // Predicated region
        $region37: #{tpu_custom_call.1} parent=27 // pred_check
          %p2876 = pneg %p85
        $region38: #{tpu_custom_call.1} parent=27 // pred_check_branch
          %2878 = sbr.rel (%p2876) target = $region40
        $region39: #{tpu_custom_call.1} parent=27 // pred_region
          %s2879 = smul.u32 2, %s20
          %s2881 = ssub.s32 16384, 16384
          %2882 = vsyncadd %s2872, %s2881
          %s2883 = smul.addr %s2879, 128
          %s2884 = scalar_lea.hbm %s2, %s2883
          %s2885 = sshll.u32 %s2875, 4
          %s2886 = int_to_ptr.vmem [resolvable:$true] %s2885
          %2891 = dma.vmem_to_hbm [thread:$0]  %s2886, 16384, %s2884, %s2872, 256, 512, 16
        $region40: #{tpu_custom_call.1} parent=27 // pred_fallthru
          _
      $region28: #{tpu_custom_call.1} parent=5 // pred_fallthru
        _
      %p2892 = scmp.le.s32.totalorder 2, %s15
      // Predicated region
      $region41: #{tpu_custom_call.1} parent=5 // pred_check
        %p2893 = pneg %p2892
      $region42: #{tpu_custom_call.1} parent=5 // pred_check_branch
        %2895 = sbr.rel (%p2893) target = $region44
      $region43: #{tpu_custom_call.1} parent=5 // pred_region
        %s2896 = ssub.s32 %s15, 2
        // Predicated region
        $region45: #{tpu_custom_call.1} parent=43 // pred_check
          %p2897 = pneg %p91
        $region46: #{tpu_custom_call.1} parent=43 // pred_check_branch
          %2899 = sbr.rel (%p2897) target = $region48
        $region47: #{tpu_custom_call.1} parent=43 // pred_region
          %s2900 = sand.u32 %s76, 1
          %s2901 = scalar_lea.sflag [#allocation4], %s2900
          %s2902 = sand.u32 %s76, 1
          %s2903 = smul.addr %s2902, 1024
          %s2904 = scalar_lea.vmem [#allocation7], %s2903
          %2905 = dma.done %s2901, 16384
        $region48: #{tpu_custom_call.1} parent=43 // pred_fallthru
          _
      $region44: #{tpu_custom_call.1} parent=5 // pred_fallthru
        _
    $region6: #{tpu_custom_call.1} parent=1 // loop_footer
      %s19 = sadd.s32 1, %s15
    $region7: #{tpu_custom_call.1} parent=1 // loop_footer_branch
      %14 = sbr.rel target = $region3
    $region8: #{tpu_custom_call.1} parent=1 // loop_exit
      _
    %2906 = vsyncpa [#allocation3], 1
    %s2907 = scalar_lea.sflag [#allocation3], 1
    %2908 = vsyncpa %s2907, 1
    %2909 = vsyncpa [#allocation6], 1
    %s2910 = scalar_lea.sflag [#allocation6], 1
    %2911 = vsyncpa %s2910, 1
    %2912 = vsyncpa [#allocation4], 1
    %s2913 = scalar_lea.sflag [#allocation4], 1
    %2914 = vsyncpa %s2913, 1

</llo_original>
